<compile_context>
chip_gen: v7x
topology: tpu7x:2x2x1
jax: 0.10.0
libtpu: 0.0.40
codegen_flags: <defaults>
</compile_context>

<pallas_src>
import jax
import jax.numpy as jnp
from jax.experimental import pallas as pl
from jax.experimental.pallas import tpu as pltpu

B, H, W = 2, 16, 34           # input spatial size chosen so flatten == 1792
C_OUT = 16
HO, WO = H - 2, W - 2         # 14, 32   (conv 3x3, stride 1, no padding)
HP, WP = HO // 2, WO // 2     # 7, 16    (maxpool 2x2, stride 2)
SPAT = HP * WP                # 112 pooled spatial positions
FLAT = C_OUT * SPAT           # 1792


# --------------------------------- fused kernel ---------------------------------
def fcn_fused_kernel(patches_ref, wc_ref, bc_ref, w11_ref, b11_ref,
                     w12c1_ref, b12c1_ref, w13c2_ref, b13c2_ref,
                     wc3_ref, bc3_ref, logits_ref, preds_ref):
    wc = wc_ref[...]            # (16, 16)  [out_channel, tap] (taps 9..15 are zero)
    bias = bc_ref[...]          # (16, 1)   conv bias as a column (broadcast over lanes)

    # ---- conv(3x3) + maxpool(2x2) + bias + relu: one MXU matmul per batch -------
    # patches[b]: (16 taps, 512 lanes = phase*128 + pooled-spatial s), s = pi*16+pj
    pooled = []
    for b in range(B):
        pt = patches_ref[b]                                          # (16, 512)
        conv = jnp.dot(wc, pt, preferred_element_type=jnp.float32)   # (16, 512)
        m = jnp.maximum(jnp.maximum(conv[:, 0:128], conv[:, 128:256]),
                        jnp.maximum(conv[:, 256:384], conv[:, 384:512]))
        # max over the 4 pooling phases; bias/relu commute with the max
        pooled.append(jnp.maximum(m + bias, 0.0))                    # (16, 128)

    # ---- fc11: contract the (channel, spatial) features channel-by-channel ------
    # w11_ref[c] is (128, 64): rows = pooled spatial (112 real + 16 zero-pad rows),
    # already permuted into PyTorch flatten order at trace time.
    acc = jnp.zeros((B, 64), jnp.float32)
    for c in range(C_OUT):
        xc = jnp.concatenate([pooled[b][c:c + 1, :] for b in range(B)], axis=0)  # (B,128)
        acc = acc + jnp.dot(xc, w11_ref[c], preferred_element_type=jnp.float32)
    h1 = jnp.maximum(acc + b11_ref[...], 0.0)                        # (B, 64)

    # ---- fc12+cls1 merged, fc13+cls2 merged, then cls3 --------------------------
    t2 = jnp.dot(h1, w12c1_ref[...],
                 preferred_element_type=jnp.float32) + b12c1_ref[...]   # (B, 34)
    h2 = jnp.maximum(t2[:, 0:32], 0.0)
    y1 = t2[:, 32:34]
    t3 = jnp.dot(h2, w13c2_ref[...],
                 preferred_element_type=jnp.float32) + b13c2_ref[...]   # (B, 34)
    h3 = jnp.maximum(t3[:, 0:32], 0.0)
    y2 = t3[:, 32:34]
    y3 = jnp.dot(h3, wc3_ref[...],
                 preferred_element_type=jnp.float32) + bc3_ref[...]     # (B, 2)

    # ---- packed lane-dense outputs ----------------------------------------------
    # logits row: [y3_0, y3_1, y2_0, y2_1, y1_0, y1_1, 0, 0]
    logits_ref[...] = jnp.concatenate(
        [y3, y2, y1, jnp.zeros((B, 2), jnp.float32)], axis=1)           # (B, 8)
    # 2-class argmax == (class1 > class0); index 0 wins ties (matches torch/jnp)
    p3 = (y3[:, 1:2] > y3[:, 0:1]).astype(jnp.int32)
    p2 = (y2[:, 1:2] > y2[:, 0:1]).astype(jnp.int32)
    p1 = (y1[:, 1:2] > y1[:, 0:1]).astype(jnp.int32)
    preds_ref[...] = jnp.concatenate(
        [p3, p2, p1, jnp.zeros((B, 5), jnp.int32)], axis=1)             # (B, 8)


def _full_spec(shape):
    return pl.BlockSpec(shape, lambda *_: (0,) * len(shape))


# ----------------------------- wrapper-side glue --------------------------------
def _im2col(x):
    """(B, H, W) -> (B, 16, 512) patches[b, tap, phase*128 + pi*16 + pj].

    tap = di*3 + dj (taps 9..15 zero), phase = a*2 + c0 is the 2x2 pooling offset,
    lanes 112..127 of each phase block are zero padding.
    """
    taps = []
    for di in range(3):
        for dj in range(3):
            phases = []
            for a in range(2):          # pooling-window row offset
                for c0 in range(2):     # pooling-window col offset
                    sl = x[:, a + di:a + di + 2 * HP:2, c0 + dj:c0 + dj + 2 * WP:2]
                    sl = sl.reshape(B, SPAT)                             # (B, 112)
                    phases.append(jnp.pad(sl, ((0, 0), (0, 128 - SPAT))))
            taps.append(jnp.concatenate(phases, axis=1))                 # (B, 512)
    patches = jnp.stack(taps, axis=1)                                    # (B, 9, 512)
    return jnp.pad(patches, ((0, 0), (0, 16 - 9), (0, 0)))               # (B, 16, 512)


def fcn_forward(x, p):
    assert x.shape == (B, H, W)

    # Trace-time weight repacking (tiny; constant-shaped, fused/folded under jit).
    wc2t = jnp.pad(p["wc"].reshape(9, C_OUT).T, ((0, 0), (0, 16 - 9)))   # (16, 16)
    bccol = p["bc"].reshape(C_OUT, 1)                                    # (16, 1)
    # fold PyTorch (C, H, W) flatten order into w11, pad spatial 112 -> 128 lanes
    w11r = jnp.pad(p["w11"].reshape(C_OUT, SPAT, 64),
                   ((0, 0), (0, 128 - SPAT), (0, 0)))                    # (16, 128, 64)
    w12c1 = jnp.concatenate([p["w12"], p["wc1"]], axis=1)                # (64, 34)
    b12c1 = jnp.concatenate([p["b12"], p["bc1"]], axis=1)                # (1, 34)
    w13c2 = jnp.concatenate([p["w13"], p["wc2"]], axis=1)                # (32, 34)
    b13c2 = jnp.concatenate([p["b13"], p["bc2"]], axis=1)                # (1, 34)

    # TODO(synk): patch extraction stays in XLA on the 4 KB input -- doing the
    # stride-2 / (7,16)->112 flatten in-kernel would need sublane<->lane relayouts.
    patches = _im2col(x)                                                 # (B, 16, 512)

    ins = (patches, wc2t, bccol, w11r, p["b11"], w12c1, b12c1, w13c2, b13c2,
           p["wc3"], p["bc3"])
    logits_p, preds_p = pl.pallas_call(
        fcn_fused_kernel,
        out_shape=(jax.ShapeDtypeStruct((B, 8), jnp.float32),
                   jax.ShapeDtypeStruct((B, 8), jnp.int32)),
        grid=(1,),
        in_specs=[_full_spec(a.shape) for a in ins],
        out_specs=(_full_spec((B, 8)), _full_spec((B, 8))),
        compiler_params=pltpu.CompilerParams(dimension_semantics=("arbitrary",)),
    )(*ins)

    # unpack: logits (B, 2, 3) with head order (y3, y2, y1); preds (B, 3) = (c3,c2,c1)
    logits = logits_p[:, 0:6].reshape(B, 3, 2).transpose(0, 2, 1)
    preds = preds_p[:, 0:3]
    return [logits, preds]


# ------------------------------ pure-JAX reference ------------------------------
def fcn_reference(x, p):
    hi = jax.lax.Precision.HIGHEST
    w_oihw = jnp.transpose(p["wc"], (2, 0, 1))[:, None, :, :]            # (16,1,3,3)
    y = jax.lax.conv_general_dilated(x[:, None, :, :], w_oihw, (1, 1), "VALID",
                                     precision=hi)
    y = jnp.maximum(y + p["bc"][0][None, :, None, None], 0.0)
    y = jax.lax.reduce_window(y, -jnp.inf, jax.lax.max, (1, 1, 2, 2), (1, 1, 2, 2),
                              "VALID")
    flat = y.reshape(B, -1)
    h1 = jnp.maximum(jnp.dot(flat, p["w11"], precision=hi) + p["b11"], 0.0)
    h2 = jnp.maximum(jnp.dot(h1, p["w12"], precision=hi) + p["b12"], 0.0)
    h3 = jnp.maximum(jnp.dot(h2, p["w13"], precision=hi) + p["b13"], 0.0)
    y1 = jnp.dot(h1, p["wc1"], precision=hi) + p["bc1"]
    y2 = jnp.dot(h2, p["wc2"], precision=hi) + p["bc2"]
    y3 = jnp.dot(h3, p["wc3"], precision=hi) + p["bc3"]
    logits = jnp.transpose(jnp.stack([y3, y2, y1], axis=1), (0, 2, 1))
    preds = jnp.stack([jnp.argmax(y3, 1), jnp.argmax(y2, 1), jnp.argmax(y1, 1)], axis=1)
    return logits, preds


# ----------------------------------- main ---------------------------------------
if __name__ == "__main__":
    keys = jax.random.split(jax.random.PRNGKey(0), 16)

    def nrm(k, shape, scale):
        return (scale * jax.random.normal(k, shape)).astype(jnp.float32)

    params = {
        "wc":  nrm(keys[0], (3, 3, C_OUT), 0.20),
        "bc":  nrm(keys[1], (1, C_OUT), 0.10),
        "w11": nrm(keys[2], (FLAT, 64), 0.02),
        "b11": nrm(keys[3], (1, 64), 0.02),
        "w12": nrm(keys[4], (64, 32), 0.10),
        "b12": nrm(keys[5], (1, 32), 0.05),
        "w13": nrm(keys[6], (32, 32), 0.10),
        "b13": nrm(keys[7], (1, 32), 0.05),
        "wc1": nrm(keys[8], (64, 2), 0.10),
        "bc1": nrm(keys[9], (1, 2), 0.05),
        "wc2": nrm(keys[10], (32, 2), 0.10),
        "bc2": nrm(keys[11], (1, 2), 0.05),
        "wc3": nrm(keys[12], (32, 2), 0.10),
        "bc3": nrm(keys[13], (1, 2), 0.05),
    }
    x = jax.random.normal(keys[14], (B, H, W), jnp.float32)

    fwd = jax.jit(fcn_forward)
    logits, preds = fwd(x, params)
    jax.block_until_ready((logits, preds))

    assert logits.shape == (B, 2, 3) and preds.shape == (B, 3)
    ref_logits, ref_preds = fcn_reference(x, params)
    assert jnp.allclose(logits, ref_logits, atol=2e-3, rtol=2e-3), \
        f"logits mismatch: {jnp.max(jnp.abs(logits - ref_logits))}"
    assert jnp.array_equal(preds, ref_preds.astype(jnp.int32)), "preds mismatch"

    print("KERNEL_OK")
</pallas_src>

<mosaic_0001>
module attributes {stable_mosaic.version = 11 : i64} {
  func.func @fcn_fused_kernel(%arg0: i32, %arg1: memref<2x16x512xf32, #tpu.memory_space<vmem>>, %arg2: memref<16x16xf32, #tpu.memory_space<vmem>>, %arg3: memref<16x1xf32, #tpu.memory_space<vmem>>, %arg4: memref<16x128x64xf32, #tpu.memory_space<vmem>>, %arg5: memref<1x64xf32, #tpu.memory_space<vmem>>, %arg6: memref<64x34xf32, #tpu.memory_space<vmem>>, %arg7: memref<1x34xf32, #tpu.memory_space<vmem>>, %arg8: memref<32x34xf32, #tpu.memory_space<vmem>>, %arg9: memref<1x34xf32, #tpu.memory_space<vmem>>, %arg10: memref<32x2xf32, #tpu.memory_space<vmem>>, %arg11: memref<1x2xf32, #tpu.memory_space<vmem>>, %arg12: memref<2x8xf32, #tpu.memory_space<vmem>>, %arg13: memref<2x8xi32, #tpu.memory_space<vmem>>) attributes {dimension_semantics = [#tpu.dimension_semantics<arbitrary>], iteration_bounds = array<i64: 1>, scalar_prefetch = 0 : i64, scratch_operands = 0 : i64, tpu.core_type = #tpu.core_type<tc>, window_params = [{pipeline_mode = #tpu.pipeline_mode<synchronous>, transform_indices = @transform_0, window_bounds = array<i64: 2, 16, 512>}, {pipeline_mode = #tpu.pipeline_mode<synchronous>, transform_indices = @transform_1, window_bounds = array<i64: 16, 16>}, {pipeline_mode = #tpu.pipeline_mode<synchronous>, transform_indices = @transform_2, window_bounds = array<i64: 16, 1>}, {pipeline_mode = #tpu.pipeline_mode<synchronous>, transform_indices = @transform_3, window_bounds = array<i64: 16, 128, 64>}, {pipeline_mode = #tpu.pipeline_mode<synchronous>, transform_indices = @transform_4, window_bounds = array<i64: 1, 64>}, {pipeline_mode = #tpu.pipeline_mode<synchronous>, transform_indices = @transform_5, window_bounds = array<i64: 64, 34>}, {pipeline_mode = #tpu.pipeline_mode<synchronous>, transform_indices = @transform_6, window_bounds = array<i64: 1, 34>}, {pipeline_mode = #tpu.pipeline_mode<synchronous>, transform_indices = @transform_7, window_bounds = array<i64: 32, 34>}, {pipeline_mode = #tpu.pipeline_mode<synchronous>, transform_indices = @transform_8, window_bounds = array<i64: 1, 34>}, {pipeline_mode = #tpu.pipeline_mode<synchronous>, transform_indices = @transform_9, window_bounds = array<i64: 32, 2>}, {pipeline_mode = #tpu.pipeline_mode<synchronous>, transform_indices = @transform_10, window_bounds = array<i64: 1, 2>}, {pipeline_mode = #tpu.pipeline_mode<synchronous>, transform_indices = @transform_11, window_bounds = array<i64: 2, 8>}, {pipeline_mode = #tpu.pipeline_mode<synchronous>, transform_indices = @transform_12, window_bounds = array<i64: 2, 8>}]} {
    %c0 = arith.constant 0 : index
    %c0_0 = arith.constant 0 : index
    %0 = vector.load %arg2[%c0, %c0_0] : memref<16x16xf32, #tpu.memory_space<vmem>>, vector<16x16xf32>
    %c0_1 = arith.constant 0 : index
    %c0_2 = arith.constant 0 : index
    %1 = vector.load %arg3[%c0_1, %c0_2] : memref<16x1xf32, #tpu.memory_space<vmem>>, vector<16x1xf32>
    %c0_3 = arith.constant 0 : index
    %c0_4 = arith.constant 0 : index
    %c0_5 = arith.constant 0 : index
    %2 = vector.load %arg1[%c0_3, %c0_4, %c0_5] : memref<2x16x512xf32, #tpu.memory_space<vmem>>, vector<1x16x512xf32>
    %3 = vector.shape_cast %2 : vector<1x16x512xf32> to vector<16x512xf32>
    %cst = arith.constant dense<0.000000e+00> : vector<16x512xf32>
    %4 = tpu.matmul %0, %3, %cst {dimension_numbers = #tpu.dot_dimension_numbers<[1], [0], [0], [1], [0, 0, 1, 1], [], []>} : vector<16x16xf32>, vector<16x512xf32>, vector<16x512xf32> -> vector<16x512xf32>
    %5 = vector.extract_strided_slice %4 {offsets = [0, 0], sizes = [16, 128], strides = [1, 1]} : vector<16x512xf32> to vector<16x128xf32>
    %6 = vector.extract_strided_slice %4 {offsets = [0, 128], sizes = [16, 128], strides = [1, 1]} : vector<16x512xf32> to vector<16x128xf32>
    %7 = arith.maximumf %5, %6 : vector<16x128xf32>
    %8 = vector.extract_strided_slice %4 {offsets = [0, 256], sizes = [16, 128], strides = [1, 1]} : vector<16x512xf32> to vector<16x128xf32>
    %9 = vector.extract_strided_slice %4 {offsets = [0, 384], sizes = [16, 128], strides = [1, 1]} : vector<16x512xf32> to vector<16x128xf32>
    %10 = arith.maximumf %8, %9 : vector<16x128xf32>
    %11 = arith.maximumf %7, %10 : vector<16x128xf32>
    %12 = vector.broadcast %1 : vector<16x1xf32> to vector<16x128xf32>
    %13 = arith.addf %11, %12 : vector<16x128xf32>
    %cst_6 = arith.constant 0.000000e+00 : f32
    %14 = vector.broadcast %cst_6 : f32 to vector<16x128xf32>
    %15 = arith.maximumf %13, %14 : vector<16x128xf32>
    %c1 = arith.constant 1 : index
    %c0_7 = arith.constant 0 : index
    %c0_8 = arith.constant 0 : index
    %16 = vector.load %arg1[%c1, %c0_7, %c0_8] : memref<2x16x512xf32, #tpu.memory_space<vmem>>, vector<1x16x512xf32>
    %17 = vector.shape_cast %16 : vector<1x16x512xf32> to vector<16x512xf32>
    %cst_9 = arith.constant dense<0.000000e+00> : vector<16x512xf32>
    %18 = tpu.matmul %0, %17, %cst_9 {dimension_numbers = #tpu.dot_dimension_numbers<[1], [0], [0], [1], [0, 0, 1, 1], [], []>} : vector<16x16xf32>, vector<16x512xf32>, vector<16x512xf32> -> vector<16x512xf32>
    %19 = vector.extract_strided_slice %18 {offsets = [0, 0], sizes = [16, 128], strides = [1, 1]} : vector<16x512xf32> to vector<16x128xf32>
    %20 = vector.extract_strided_slice %18 {offsets = [0, 128], sizes = [16, 128], strides = [1, 1]} : vector<16x512xf32> to vector<16x128xf32>
    %21 = arith.maximumf %19, %20 : vector<16x128xf32>
    %22 = vector.extract_strided_slice %18 {offsets = [0, 256], sizes = [16, 128], strides = [1, 1]} : vector<16x512xf32> to vector<16x128xf32>
    %23 = vector.extract_strided_slice %18 {offsets = [0, 384], sizes = [16, 128], strides = [1, 1]} : vector<16x512xf32> to vector<16x128xf32>
    %24 = arith.maximumf %22, %23 : vector<16x128xf32>
    %25 = arith.maximumf %21, %24 : vector<16x128xf32>
    %26 = vector.broadcast %1 : vector<16x1xf32> to vector<16x128xf32>
    %27 = arith.addf %25, %26 : vector<16x128xf32>
    %cst_10 = arith.constant 0.000000e+00 : f32
    %28 = vector.broadcast %cst_10 : f32 to vector<16x128xf32>
    %29 = arith.maximumf %27, %28 : vector<16x128xf32>
    %cst_11 = arith.constant 0.000000e+00 : f32
    %30 = vector.broadcast %cst_11 : f32 to vector<2x64xf32>
    %31 = vector.extract_strided_slice %15 {offsets = [0, 0], sizes = [1, 128], strides = [1, 1]} : vector<16x128xf32> to vector<1x128xf32>
    %32 = vector.extract_strided_slice %29 {offsets = [0, 0], sizes = [1, 128], strides = [1, 1]} : vector<16x128xf32> to vector<1x128xf32>
    %33 = tpu.concatenate %31, %32 in 0 : vector<1x128xf32>, vector<1x128xf32> -> vector<2x128xf32>
    %c0_12 = arith.constant 0 : index
    %c0_13 = arith.constant 0 : index
    %c0_14 = arith.constant 0 : index
    %34 = vector.load %arg4[%c0_12, %c0_13, %c0_14] : memref<16x128x64xf32, #tpu.memory_space<vmem>>, vector<1x128x64xf32>
    %35 = vector.shape_cast %34 : vector<1x128x64xf32> to vector<128x64xf32>
    %cst_15 = arith.constant dense<0.000000e+00> : vector<2x64xf32>
    %36 = tpu.matmul %33, %35, %cst_15 {dimension_numbers = #tpu.dot_dimension_numbers<[1], [0], [0], [1], [0, 0, 1, 1], [], []>} : vector<2x128xf32>, vector<128x64xf32>, vector<2x64xf32> -> vector<2x64xf32>
    %37 = arith.addf %30, %36 : vector<2x64xf32>
    %38 = vector.extract_strided_slice %15 {offsets = [1, 0], sizes = [1, 128], strides = [1, 1]} : vector<16x128xf32> to vector<1x128xf32>
    %39 = vector.extract_strided_slice %29 {offsets = [1, 0], sizes = [1, 128], strides = [1, 1]} : vector<16x128xf32> to vector<1x128xf32>
    %40 = tpu.concatenate %38, %39 in 0 : vector<1x128xf32>, vector<1x128xf32> -> vector<2x128xf32>
    %c1_16 = arith.constant 1 : index
    %c0_17 = arith.constant 0 : index
    %c0_18 = arith.constant 0 : index
    %41 = vector.load %arg4[%c1_16, %c0_17, %c0_18] : memref<16x128x64xf32, #tpu.memory_space<vmem>>, vector<1x128x64xf32>
    %42 = vector.shape_cast %41 : vector<1x128x64xf32> to vector<128x64xf32>
    %cst_19 = arith.constant dense<0.000000e+00> : vector<2x64xf32>
    %43 = tpu.matmul %40, %42, %cst_19 {dimension_numbers = #tpu.dot_dimension_numbers<[1], [0], [0], [1], [0, 0, 1, 1], [], []>} : vector<2x128xf32>, vector<128x64xf32>, vector<2x64xf32> -> vector<2x64xf32>
    %44 = arith.addf %37, %43 : vector<2x64xf32>
    %45 = vector.extract_strided_slice %15 {offsets = [2, 0], sizes = [1, 128], strides = [1, 1]} : vector<16x128xf32> to vector<1x128xf32>
    %46 = vector.extract_strided_slice %29 {offsets = [2, 0], sizes = [1, 128], strides = [1, 1]} : vector<16x128xf32> to vector<1x128xf32>
    %47 = tpu.concatenate %45, %46 in 0 : vector<1x128xf32>, vector<1x128xf32> -> vector<2x128xf32>
    %c2 = arith.constant 2 : index
    %c0_20 = arith.constant 0 : index
    %c0_21 = arith.constant 0 : index
    %48 = vector.load %arg4[%c2, %c0_20, %c0_21] : memref<16x128x64xf32, #tpu.memory_space<vmem>>, vector<1x128x64xf32>
    %49 = vector.shape_cast %48 : vector<1x128x64xf32> to vector<128x64xf32>
    %cst_22 = arith.constant dense<0.000000e+00> : vector<2x64xf32>
    %50 = tpu.matmul %47, %49, %cst_22 {dimension_numbers = #tpu.dot_dimension_numbers<[1], [0], [0], [1], [0, 0, 1, 1], [], []>} : vector<2x128xf32>, vector<128x64xf32>, vector<2x64xf32> -> vector<2x64xf32>
    %51 = arith.addf %44, %50 : vector<2x64xf32>
    %52 = vector.extract_strided_slice %15 {offsets = [3, 0], sizes = [1, 128], strides = [1, 1]} : vector<16x128xf32> to vector<1x128xf32>
    %53 = vector.extract_strided_slice %29 {offsets = [3, 0], sizes = [1, 128], strides = [1, 1]} : vector<16x128xf32> to vector<1x128xf32>
    %54 = tpu.concatenate %52, %53 in 0 : vector<1x128xf32>, vector<1x128xf32> -> vector<2x128xf32>
    %c3 = arith.constant 3 : index
    %c0_23 = arith.constant 0 : index
    %c0_24 = arith.constant 0 : index
    %55 = vector.load %arg4[%c3, %c0_23, %c0_24] : memref<16x128x64xf32, #tpu.memory_space<vmem>>, vector<1x128x64xf32>
    %56 = vector.shape_cast %55 : vector<1x128x64xf32> to vector<128x64xf32>
    %cst_25 = arith.constant dense<0.000000e+00> : vector<2x64xf32>
    %57 = tpu.matmul %54, %56, %cst_25 {dimension_numbers = #tpu.dot_dimension_numbers<[1], [0], [0], [1], [0, 0, 1, 1], [], []>} : vector<2x128xf32>, vector<128x64xf32>, vector<2x64xf32> -> vector<2x64xf32>
    %58 = arith.addf %51, %57 : vector<2x64xf32>
    %59 = vector.extract_strided_slice %15 {offsets = [4, 0], sizes = [1, 128], strides = [1, 1]} : vector<16x128xf32> to vector<1x128xf32>
    %60 = vector.extract_strided_slice %29 {offsets = [4, 0], sizes = [1, 128], strides = [1, 1]} : vector<16x128xf32> to vector<1x128xf32>
    %61 = tpu.concatenate %59, %60 in 0 : vector<1x128xf32>, vector<1x128xf32> -> vector<2x128xf32>
    %c4 = arith.constant 4 : index
    %c0_26 = arith.constant 0 : index
    %c0_27 = arith.constant 0 : index
    %62 = vector.load %arg4[%c4, %c0_26, %c0_27] : memref<16x128x64xf32, #tpu.memory_space<vmem>>, vector<1x128x64xf32>
    %63 = vector.shape_cast %62 : vector<1x128x64xf32> to vector<128x64xf32>
    %cst_28 = arith.constant dense<0.000000e+00> : vector<2x64xf32>
    %64 = tpu.matmul %61, %63, %cst_28 {dimension_numbers = #tpu.dot_dimension_numbers<[1], [0], [0], [1], [0, 0, 1, 1], [], []>} : vector<2x128xf32>, vector<128x64xf32>, vector<2x64xf32> -> vector<2x64xf32>
    %65 = arith.addf %58, %64 : vector<2x64xf32>
    %66 = vector.extract_strided_slice %15 {offsets = [5, 0], sizes = [1, 128], strides = [1, 1]} : vector<16x128xf32> to vector<1x128xf32>
    %67 = vector.extract_strided_slice %29 {offsets = [5, 0], sizes = [1, 128], strides = [1, 1]} : vector<16x128xf32> to vector<1x128xf32>
    %68 = tpu.concatenate %66, %67 in 0 : vector<1x128xf32>, vector<1x128xf32> -> vector<2x128xf32>
    %c5 = arith.constant 5 : index
    %c0_29 = arith.constant 0 : index
    %c0_30 = arith.constant 0 : index
    %69 = vector.load %arg4[%c5, %c0_29, %c0_30] : memref<16x128x64xf32, #tpu.memory_space<vmem>>, vector<1x128x64xf32>
    %70 = vector.shape_cast %69 : vector<1x128x64xf32> to vector<128x64xf32>
    %cst_31 = arith.constant dense<0.000000e+00> : vector<2x64xf32>
    %71 = tpu.matmul %68, %70, %cst_31 {dimension_numbers = #tpu.dot_dimension_numbers<[1], [0], [0], [1], [0, 0, 1, 1], [], []>} : vector<2x128xf32>, vector<128x64xf32>, vector<2x64xf32> -> vector<2x64xf32>
    %72 = arith.addf %65, %71 : vector<2x64xf32>
    %73 = vector.extract_strided_slice %15 {offsets = [6, 0], sizes = [1, 128], strides = [1, 1]} : vector<16x128xf32> to vector<1x128xf32>
    %74 = vector.extract_strided_slice %29 {offsets = [6, 0], sizes = [1, 128], strides = [1, 1]} : vector<16x128xf32> to vector<1x128xf32>
    %75 = tpu.concatenate %73, %74 in 0 : vector<1x128xf32>, vector<1x128xf32> -> vector<2x128xf32>
    %c6 = arith.constant 6 : index
    %c0_32 = arith.constant 0 : index
    %c0_33 = arith.constant 0 : index
    %76 = vector.load %arg4[%c6, %c0_32, %c0_33] : memref<16x128x64xf32, #tpu.memory_space<vmem>>, vector<1x128x64xf32>
    %77 = vector.shape_cast %76 : vector<1x128x64xf32> to vector<128x64xf32>
    %cst_34 = arith.constant dense<0.000000e+00> : vector<2x64xf32>
    %78 = tpu.matmul %75, %77, %cst_34 {dimension_numbers = #tpu.dot_dimension_numbers<[1], [0], [0], [1], [0, 0, 1, 1], [], []>} : vector<2x128xf32>, vector<128x64xf32>, vector<2x64xf32> -> vector<2x64xf32>
    %79 = arith.addf %72, %78 : vector<2x64xf32>
    %80 = vector.extract_strided_slice %15 {offsets = [7, 0], sizes = [1, 128], strides = [1, 1]} : vector<16x128xf32> to vector<1x128xf32>
    %81 = vector.extract_strided_slice %29 {offsets = [7, 0], sizes = [1, 128], strides = [1, 1]} : vector<16x128xf32> to vector<1x128xf32>
    %82 = tpu.concatenate %80, %81 in 0 : vector<1x128xf32>, vector<1x128xf32> -> vector<2x128xf32>
    %c7 = arith.constant 7 : index
    %c0_35 = arith.constant 0 : index
    %c0_36 = arith.constant 0 : index
    %83 = vector.load %arg4[%c7, %c0_35, %c0_36] : memref<16x128x64xf32, #tpu.memory_space<vmem>>, vector<1x128x64xf32>
    %84 = vector.shape_cast %83 : vector<1x128x64xf32> to vector<128x64xf32>
    %cst_37 = arith.constant dense<0.000000e+00> : vector<2x64xf32>
    %85 = tpu.matmul %82, %84, %cst_37 {dimension_numbers = #tpu.dot_dimension_numbers<[1], [0], [0], [1], [0, 0, 1, 1], [], []>} : vector<2x128xf32>, vector<128x64xf32>, vector<2x64xf32> -> vector<2x64xf32>
    %86 = arith.addf %79, %85 : vector<2x64xf32>
    %87 = vector.extract_strided_slice %15 {offsets = [8, 0], sizes = [1, 128], strides = [1, 1]} : vector<16x128xf32> to vector<1x128xf32>
    %88 = vector.extract_strided_slice %29 {offsets = [8, 0], sizes = [1, 128], strides = [1, 1]} : vector<16x128xf32> to vector<1x128xf32>
    %89 = tpu.concatenate %87, %88 in 0 : vector<1x128xf32>, vector<1x128xf32> -> vector<2x128xf32>
    %c8 = arith.constant 8 : index
    %c0_38 = arith.constant 0 : index
    %c0_39 = arith.constant 0 : index
    %90 = vector.load %arg4[%c8, %c0_38, %c0_39] : memref<16x128x64xf32, #tpu.memory_space<vmem>>, vector<1x128x64xf32>
    %91 = vector.shape_cast %90 : vector<1x128x64xf32> to vector<128x64xf32>
    %cst_40 = arith.constant dense<0.000000e+00> : vector<2x64xf32>
    %92 = tpu.matmul %89, %91, %cst_40 {dimension_numbers = #tpu.dot_dimension_numbers<[1], [0], [0], [1], [0, 0, 1, 1], [], []>} : vector<2x128xf32>, vector<128x64xf32>, vector<2x64xf32> -> vector<2x64xf32>
    %93 = arith.addf %86, %92 : vector<2x64xf32>
    %94 = vector.extract_strided_slice %15 {offsets = [9, 0], sizes = [1, 128], strides = [1, 1]} : vector<16x128xf32> to vector<1x128xf32>
    %95 = vector.extract_strided_slice %29 {offsets = [9, 0], sizes = [1, 128], strides = [1, 1]} : vector<16x128xf32> to vector<1x128xf32>
    %96 = tpu.concatenate %94, %95 in 0 : vector<1x128xf32>, vector<1x128xf32> -> vector<2x128xf32>
    %c9 = arith.constant 9 : index
    %c0_41 = arith.constant 0 : index
    %c0_42 = arith.constant 0 : index
    %97 = vector.load %arg4[%c9, %c0_41, %c0_42] : memref<16x128x64xf32, #tpu.memory_space<vmem>>, vector<1x128x64xf32>
    %98 = vector.shape_cast %97 : vector<1x128x64xf32> to vector<128x64xf32>
    %cst_43 = arith.constant dense<0.000000e+00> : vector<2x64xf32>
    %99 = tpu.matmul %96, %98, %cst_43 {dimension_numbers = #tpu.dot_dimension_numbers<[1], [0], [0], [1], [0, 0, 1, 1], [], []>} : vector<2x128xf32>, vector<128x64xf32>, vector<2x64xf32> -> vector<2x64xf32>
    %100 = arith.addf %93, %99 : vector<2x64xf32>
    %101 = vector.extract_strided_slice %15 {offsets = [10, 0], sizes = [1, 128], strides = [1, 1]} : vector<16x128xf32> to vector<1x128xf32>
    %102 = vector.extract_strided_slice %29 {offsets = [10, 0], sizes = [1, 128], strides = [1, 1]} : vector<16x128xf32> to vector<1x128xf32>
    %103 = tpu.concatenate %101, %102 in 0 : vector<1x128xf32>, vector<1x128xf32> -> vector<2x128xf32>
    %c10 = arith.constant 10 : index
    %c0_44 = arith.constant 0 : index
    %c0_45 = arith.constant 0 : index
    %104 = vector.load %arg4[%c10, %c0_44, %c0_45] : memref<16x128x64xf32, #tpu.memory_space<vmem>>, vector<1x128x64xf32>
    %105 = vector.shape_cast %104 : vector<1x128x64xf32> to vector<128x64xf32>
    %cst_46 = arith.constant dense<0.000000e+00> : vector<2x64xf32>
    %106 = tpu.matmul %103, %105, %cst_46 {dimension_numbers = #tpu.dot_dimension_numbers<[1], [0], [0], [1], [0, 0, 1, 1], [], []>} : vector<2x128xf32>, vector<128x64xf32>, vector<2x64xf32> -> vector<2x64xf32>
    %107 = arith.addf %100, %106 : vector<2x64xf32>
    %108 = vector.extract_strided_slice %15 {offsets = [11, 0], sizes = [1, 128], strides = [1, 1]} : vector<16x128xf32> to vector<1x128xf32>
    %109 = vector.extract_strided_slice %29 {offsets = [11, 0], sizes = [1, 128], strides = [1, 1]} : vector<16x128xf32> to vector<1x128xf32>
    %110 = tpu.concatenate %108, %109 in 0 : vector<1x128xf32>, vector<1x128xf32> -> vector<2x128xf32>
    %c11 = arith.constant 11 : index
    %c0_47 = arith.constant 0 : index
    %c0_48 = arith.constant 0 : index
    %111 = vector.load %arg4[%c11, %c0_47, %c0_48] : memref<16x128x64xf32, #tpu.memory_space<vmem>>, vector<1x128x64xf32>
    %112 = vector.shape_cast %111 : vector<1x128x64xf32> to vector<128x64xf32>
    %cst_49 = arith.constant dense<0.000000e+00> : vector<2x64xf32>
    %113 = tpu.matmul %110, %112, %cst_49 {dimension_numbers = #tpu.dot_dimension_numbers<[1], [0], [0], [1], [0, 0, 1, 1], [], []>} : vector<2x128xf32>, vector<128x64xf32>, vector<2x64xf32> -> vector<2x64xf32>
    %114 = arith.addf %107, %113 : vector<2x64xf32>
    %115 = vector.extract_strided_slice %15 {offsets = [12, 0], sizes = [1, 128], strides = [1, 1]} : vector<16x128xf32> to vector<1x128xf32>
    %116 = vector.extract_strided_slice %29 {offsets = [12, 0], sizes = [1, 128], strides = [1, 1]} : vector<16x128xf32> to vector<1x128xf32>
    %117 = tpu.concatenate %115, %116 in 0 : vector<1x128xf32>, vector<1x128xf32> -> vector<2x128xf32>
    %c12 = arith.constant 12 : index
    %c0_50 = arith.constant 0 : index
    %c0_51 = arith.constant 0 : index
    %118 = vector.load %arg4[%c12, %c0_50, %c0_51] : memref<16x128x64xf32, #tpu.memory_space<vmem>>, vector<1x128x64xf32>
    %119 = vector.shape_cast %118 : vector<1x128x64xf32> to vector<128x64xf32>
    %cst_52 = arith.constant dense<0.000000e+00> : vector<2x64xf32>
    %120 = tpu.matmul %117, %119, %cst_52 {dimension_numbers = #tpu.dot_dimension_numbers<[1], [0], [0], [1], [0, 0, 1, 1], [], []>} : vector<2x128xf32>, vector<128x64xf32>, vector<2x64xf32> -> vector<2x64xf32>
    %121 = arith.addf %114, %120 : vector<2x64xf32>
    %122 = vector.extract_strided_slice %15 {offsets = [13, 0], sizes = [1, 128], strides = [1, 1]} : vector<16x128xf32> to vector<1x128xf32>
    %123 = vector.extract_strided_slice %29 {offsets = [13, 0], sizes = [1, 128], strides = [1, 1]} : vector<16x128xf32> to vector<1x128xf32>
    %124 = tpu.concatenate %122, %123 in 0 : vector<1x128xf32>, vector<1x128xf32> -> vector<2x128xf32>
    %c13 = arith.constant 13 : index
    %c0_53 = arith.constant 0 : index
    %c0_54 = arith.constant 0 : index
    %125 = vector.load %arg4[%c13, %c0_53, %c0_54] : memref<16x128x64xf32, #tpu.memory_space<vmem>>, vector<1x128x64xf32>
    %126 = vector.shape_cast %125 : vector<1x128x64xf32> to vector<128x64xf32>
    %cst_55 = arith.constant dense<0.000000e+00> : vector<2x64xf32>
    %127 = tpu.matmul %124, %126, %cst_55 {dimension_numbers = #tpu.dot_dimension_numbers<[1], [0], [0], [1], [0, 0, 1, 1], [], []>} : vector<2x128xf32>, vector<128x64xf32>, vector<2x64xf32> -> vector<2x64xf32>
    %128 = arith.addf %121, %127 : vector<2x64xf32>
    %129 = vector.extract_strided_slice %15 {offsets = [14, 0], sizes = [1, 128], strides = [1, 1]} : vector<16x128xf32> to vector<1x128xf32>
    %130 = vector.extract_strided_slice %29 {offsets = [14, 0], sizes = [1, 128], strides = [1, 1]} : vector<16x128xf32> to vector<1x128xf32>
    %131 = tpu.concatenate %129, %130 in 0 : vector<1x128xf32>, vector<1x128xf32> -> vector<2x128xf32>
    %c14 = arith.constant 14 : index
    %c0_56 = arith.constant 0 : index
    %c0_57 = arith.constant 0 : index
    %132 = vector.load %arg4[%c14, %c0_56, %c0_57] : memref<16x128x64xf32, #tpu.memory_space<vmem>>, vector<1x128x64xf32>
    %133 = vector.shape_cast %132 : vector<1x128x64xf32> to vector<128x64xf32>
    %cst_58 = arith.constant dense<0.000000e+00> : vector<2x64xf32>
    %134 = tpu.matmul %131, %133, %cst_58 {dimension_numbers = #tpu.dot_dimension_numbers<[1], [0], [0], [1], [0, 0, 1, 1], [], []>} : vector<2x128xf32>, vector<128x64xf32>, vector<2x64xf32> -> vector<2x64xf32>
    %135 = arith.addf %128, %134 : vector<2x64xf32>
    %136 = vector.extract_strided_slice %15 {offsets = [15, 0], sizes = [1, 128], strides = [1, 1]} : vector<16x128xf32> to vector<1x128xf32>
    %137 = vector.extract_strided_slice %29 {offsets = [15, 0], sizes = [1, 128], strides = [1, 1]} : vector<16x128xf32> to vector<1x128xf32>
    %138 = tpu.concatenate %136, %137 in 0 : vector<1x128xf32>, vector<1x128xf32> -> vector<2x128xf32>
    %c15 = arith.constant 15 : index
    %c0_59 = arith.constant 0 : index
    %c0_60 = arith.constant 0 : index
    %139 = vector.load %arg4[%c15, %c0_59, %c0_60] : memref<16x128x64xf32, #tpu.memory_space<vmem>>, vector<1x128x64xf32>
    %140 = vector.shape_cast %139 : vector<1x128x64xf32> to vector<128x64xf32>
    %cst_61 = arith.constant dense<0.000000e+00> : vector<2x64xf32>
    %141 = tpu.matmul %138, %140, %cst_61 {dimension_numbers = #tpu.dot_dimension_numbers<[1], [0], [0], [1], [0, 0, 1, 1], [], []>} : vector<2x128xf32>, vector<128x64xf32>, vector<2x64xf32> -> vector<2x64xf32>
    %142 = arith.addf %135, %141 : vector<2x64xf32>
    %c0_62 = arith.constant 0 : index
    %c0_63 = arith.constant 0 : index
    %143 = vector.load %arg5[%c0_62, %c0_63] : memref<1x64xf32, #tpu.memory_space<vmem>>, vector<1x64xf32>
    %144 = vector.broadcast %143 : vector<1x64xf32> to vector<2x64xf32>
    %145 = arith.addf %142, %144 : vector<2x64xf32>
    %cst_64 = arith.constant 0.000000e+00 : f32
    %146 = vector.broadcast %cst_64 : f32 to vector<2x64xf32>
    %147 = arith.maximumf %145, %146 : vector<2x64xf32>
    %c0_65 = arith.constant 0 : index
    %c0_66 = arith.constant 0 : index
    %148 = vector.load %arg6[%c0_65, %c0_66] : memref<64x34xf32, #tpu.memory_space<vmem>>, vector<64x34xf32>
    %cst_67 = arith.constant dense<0.000000e+00> : vector<2x34xf32>
    %149 = tpu.matmul %147, %148, %cst_67 {dimension_numbers = #tpu.dot_dimension_numbers<[1], [0], [0], [1], [0, 0, 1, 1], [], []>} : vector<2x64xf32>, vector<64x34xf32>, vector<2x34xf32> -> vector<2x34xf32>
    %c0_68 = arith.constant 0 : index
    %c0_69 = arith.constant 0 : index
    %150 = vector.load %arg7[%c0_68, %c0_69] : memref<1x34xf32, #tpu.memory_space<vmem>>, vector<1x34xf32>
    %151 = vector.broadcast %150 : vector<1x34xf32> to vector<2x34xf32>
    %152 = arith.addf %149, %151 : vector<2x34xf32>
    %153 = vector.extract_strided_slice %152 {offsets = [0, 0], sizes = [2, 32], strides = [1, 1]} : vector<2x34xf32> to vector<2x32xf32>
    %cst_70 = arith.constant 0.000000e+00 : f32
    %154 = vector.broadcast %cst_70 : f32 to vector<2x32xf32>
    %155 = arith.maximumf %153, %154 : vector<2x32xf32>
    %156 = vector.extract_strided_slice %152 {offsets = [0, 32], sizes = [2, 2], strides = [1, 1]} : vector<2x34xf32> to vector<2x2xf32>
    %c0_71 = arith.constant 0 : index
    %c0_72 = arith.constant 0 : index
    %157 = vector.load %arg8[%c0_71, %c0_72] : memref<32x34xf32, #tpu.memory_space<vmem>>, vector<32x34xf32>
    %cst_73 = arith.constant dense<0.000000e+00> : vector<2x34xf32>
    %158 = tpu.matmul %155, %157, %cst_73 {dimension_numbers = #tpu.dot_dimension_numbers<[1], [0], [0], [1], [0, 0, 1, 1], [], []>} : vector<2x32xf32>, vector<32x34xf32>, vector<2x34xf32> -> vector<2x34xf32>
    %c0_74 = arith.constant 0 : index
    %c0_75 = arith.constant 0 : index
    %159 = vector.load %arg9[%c0_74, %c0_75] : memref<1x34xf32, #tpu.memory_space<vmem>>, vector<1x34xf32>
    %160 = vector.broadcast %159 : vector<1x34xf32> to vector<2x34xf32>
    %161 = arith.addf %158, %160 : vector<2x34xf32>
    %162 = vector.extract_strided_slice %161 {offsets = [0, 0], sizes = [2, 32], strides = [1, 1]} : vector<2x34xf32> to vector<2x32xf32>
    %cst_76 = arith.constant 0.000000e+00 : f32
    %163 = vector.broadcast %cst_76 : f32 to vector<2x32xf32>
    %164 = arith.maximumf %162, %163 : vector<2x32xf32>
    %165 = vector.extract_strided_slice %161 {offsets = [0, 32], sizes = [2, 2], strides = [1, 1]} : vector<2x34xf32> to vector<2x2xf32>
    %c0_77 = arith.constant 0 : index
    %c0_78 = arith.constant 0 : index
    %166 = vector.load %arg10[%c0_77, %c0_78] : memref<32x2xf32, #tpu.memory_space<vmem>>, vector<32x2xf32>
    %cst_79 = arith.constant dense<0.000000e+00> : vector<2x2xf32>
    %167 = tpu.matmul %164, %166, %cst_79 {dimension_numbers = #tpu.dot_dimension_numbers<[1], [0], [0], [1], [0, 0, 1, 1], [], []>} : vector<2x32xf32>, vector<32x2xf32>, vector<2x2xf32> -> vector<2x2xf32>
    %c0_80 = arith.constant 0 : index
    %c0_81 = arith.constant 0 : index
    %168 = vector.load %arg11[%c0_80, %c0_81] : memref<1x2xf32, #tpu.memory_space<vmem>>, vector<1x2xf32>
    %169 = vector.broadcast %168 : vector<1x2xf32> to vector<2x2xf32>
    %170 = arith.addf %167, %169 : vector<2x2xf32>
    %cst_82 = arith.constant 0.000000e+00 : f32
    %171 = vector.broadcast %cst_82 : f32 to vector<2x2xf32>
    %172 = tpu.concatenate %170, %165, %156, %171 in 1 : vector<2x2xf32>, vector<2x2xf32>, vector<2x2xf32>, vector<2x2xf32> -> vector<2x8xf32>
    %c0_83 = arith.constant 0 : index
    %c0_84 = arith.constant 0 : index
    %173 = vector.load %arg12[%c0_83, %c0_84] : memref<2x8xf32, #tpu.memory_space<vmem>>, vector<2x8xf32>
    tpu.vector_store %arg12[%c0_83, %c0_84], %172 {strides = array<i32>} : memref<2x8xf32, #tpu.memory_space<vmem>>, vector<2x8xf32>,
    %174 = vector.extract_strided_slice %170 {offsets = [0, 1], sizes = [2, 1], strides = [1, 1]} : vector<2x2xf32> to vector<2x1xf32>
    %175 = vector.extract_strided_slice %170 {offsets = [0, 0], sizes = [2, 1], strides = [1, 1]} : vector<2x2xf32> to vector<2x1xf32>
    %176 = arith.cmpf ogt, %174, %175 : vector<2x1xf32>
    %177 = arith.extui %176 : vector<2x1xi1> to vector<2x1xi32>
    %178 = vector.extract_strided_slice %165 {offsets = [0, 1], sizes = [2, 1], strides = [1, 1]} : vector<2x2xf32> to vector<2x1xf32>
    %179 = vector.extract_strided_slice %165 {offsets = [0, 0], sizes = [2, 1], strides = [1, 1]} : vector<2x2xf32> to vector<2x1xf32>
    %180 = arith.cmpf ogt, %178, %179 : vector<2x1xf32>
    %181 = arith.extui %180 : vector<2x1xi1> to vector<2x1xi32>
    %182 = vector.extract_strided_slice %156 {offsets = [0, 1], sizes = [2, 1], strides = [1, 1]} : vector<2x2xf32> to vector<2x1xf32>
    %183 = vector.extract_strided_slice %156 {offsets = [0, 0], sizes = [2, 1], strides = [1, 1]} : vector<2x2xf32> to vector<2x1xf32>
    %184 = arith.cmpf ogt, %182, %183 : vector<2x1xf32>
    %185 = arith.extui %184 : vector<2x1xi1> to vector<2x1xi32>
    %c0_i32 = arith.constant 0 : i32
    %186 = vector.broadcast %c0_i32 : i32 to vector<2x5xi32>
    %187 = tpu.concatenate %177, %181, %185, %186 in 1 : vector<2x1xi32>, vector<2x1xi32>, vector<2x1xi32>, vector<2x5xi32> -> vector<2x8xi32>
    %c0_85 = arith.constant 0 : index
    %c0_86 = arith.constant 0 : index
    %188 = vector.load %arg13[%c0_85, %c0_86] : memref<2x8xi32, #tpu.memory_space<vmem>>, vector<2x8xi32>
    tpu.vector_store %arg13[%c0_85, %c0_86], %187 {strides = array<i32>} : memref<2x8xi32, #tpu.memory_space<vmem>>, vector<2x8xi32>,
    return
  }
  func.func @transform_0(%arg0: i32) -> (i32, i32, i32) {
    %c0_i32 = arith.constant 0 : i32
    %c0_i32_0 = arith.constant 0 : i32
    %c0_i32_1 = arith.constant 0 : i32
    %c0_i32_2 = arith.constant 0 : i32
    return %c0_i32, %c0_i32_0, %c0_i32_1 : i32, i32, i32
  }
  func.func @transform_1(%arg0: i32) -> (i32, i32) {
    %c0_i32 = arith.constant 0 : i32
    %c0_i32_0 = arith.constant 0 : i32
    %c0_i32_1 = arith.constant 0 : i32
    return %c0_i32, %c0_i32_0 : i32, i32
  }
  func.func @transform_2(%arg0: i32) -> (i32, i32) {
    %c0_i32 = arith.constant 0 : i32
    %c0_i32_0 = arith.constant 0 : i32
    %c0_i32_1 = arith.constant 0 : i32
    return %c0_i32, %c0_i32_0 : i32, i32
  }
  func.func @transform_3(%arg0: i32) -> (i32, i32, i32) {
    %c0_i32 = arith.constant 0 : i32
    %c0_i32_0 = arith.constant 0 : i32
    %c0_i32_1 = arith.constant 0 : i32
    %c0_i32_2 = arith.constant 0 : i32
    return %c0_i32, %c0_i32_0, %c0_i32_1 : i32, i32, i32
  }
  func.func @transform_4(%arg0: i32) -> (i32, i32) {
    %c0_i32 = arith.constant 0 : i32
    %c0_i32_0 = arith.constant 0 : i32
    %c0_i32_1 = arith.constant 0 : i32
    return %c0_i32, %c0_i32_0 : i32, i32
  }
  func.func @transform_5(%arg0: i32) -> (i32, i32) {
    %c0_i32 = arith.constant 0 : i32
    %c0_i32_0 = arith.constant 0 : i32
    %c0_i32_1 = arith.constant 0 : i32
    return %c0_i32, %c0_i32_0 : i32, i32
  }
  func.func @transform_6(%arg0: i32) -> (i32, i32) {
    %c0_i32 = arith.constant 0 : i32
    %c0_i32_0 = arith.constant 0 : i32
    %c0_i32_1 = arith.constant 0 : i32
    return %c0_i32, %c0_i32_0 : i32, i32
  }
  func.func @transform_7(%arg0: i32) -> (i32, i32) {
    %c0_i32 = arith.constant 0 : i32
    %c0_i32_0 = arith.constant 0 : i32
    %c0_i32_1 = arith.constant 0 : i32
    return %c0_i32, %c0_i32_0 : i32, i32
  }
  func.func @transform_8(%arg0: i32) -> (i32, i32) {
    %c0_i32 = arith.constant 0 : i32
    %c0_i32_0 = arith.constant 0 : i32
    %c0_i32_1 = arith.constant 0 : i32
    return %c0_i32, %c0_i32_0 : i32, i32
  }
  func.func @transform_9(%arg0: i32) -> (i32, i32) {
    %c0_i32 = arith.constant 0 : i32
    %c0_i32_0 = arith.constant 0 : i32
    %c0_i32_1 = arith.constant 0 : i32
    return %c0_i32, %c0_i32_0 : i32, i32
  }
  func.func @transform_10(%arg0: i32) -> (i32, i32) {
    %c0_i32 = arith.constant 0 : i32
    %c0_i32_0 = arith.constant 0 : i32
    %c0_i32_1 = arith.constant 0 : i32
    return %c0_i32, %c0_i32_0 : i32, i32
  }
  func.func @transform_11(%arg0: i32) -> (i32, i32) {
    %c0_i32 = arith.constant 0 : i32
    %c0_i32_0 = arith.constant 0 : i32
    %c0_i32_1 = arith.constant 0 : i32
    return %c0_i32, %c0_i32_0 : i32, i32
  }
  func.func @transform_12(%arg0: i32) -> (i32, i32) {
    %c0_i32 = arith.constant 0 : i32
    %c0_i32_0 = arith.constant 0 : i32
    %c0_i32_1 = arith.constant 0 : i32
    return %c0_i32, %c0_i32_0 : i32, i32
  }
}

</mosaic_0001>

<llo_original>
// kernel: fcn_forward.1
$region0: #{fcn_forward.1}
  #allocation0 [shape = 'u32[]', space=smem, size = 0x4, offset = 0x4, fixed_abs, tag = 'smem constant byte address 0x4 - core index']
  #allocation1 [shape = 'u32[144,128]{1,0:T(1,128)}', space=vmem, size = 0x12000, scoped, tag = 'internal scratch']
  %s0 = inlined_call_operand.vmem [shape: f32[2,16,512], index: 0, kind: input, shape index: {}]
  %s1 = inlined_call_operand.vmem [shape: f32[16,16], index: 1, kind: input, shape index: {}]
  %s2 = inlined_call_operand.vmem [shape: f32[16,1], index: 2, kind: input, shape index: {}]
  %s3 = inlined_call_operand.vmem [shape: f32[16,128,64], index: 3, kind: input, shape index: {}]
  %s4 = inlined_call_operand.vmem [shape: f32[1,64], index: 4, kind: input, shape index: {}]
  %s5 = inlined_call_operand.vmem [shape: f32[64,34], index: 5, kind: input, shape index: {}]
  %s6 = inlined_call_operand.vmem [shape: f32[1,34], index: 6, kind: input, shape index: {}]
  %s7 = inlined_call_operand.vmem [shape: f32[32,34], index: 7, kind: input, shape index: {}]
  %s8 = inlined_call_operand.vmem [shape: f32[1,34], index: 8, kind: input, shape index: {}]
  %s9 = inlined_call_operand.vmem [shape: f32[32,2], index: 9, kind: input, shape index: {}]
  %s10 = inlined_call_operand.vmem [shape: f32[1,2], index: 10, kind: input, shape index: {}]
  %s11 = inlined_call_operand.vmem [shape: f32[2,8], index: 11, kind: output, shape index: {0}]
  %s12 = inlined_call_operand.hbm [shape: s32[2,8], index: 12, kind: output, shape index: {1}]
  %13 = xla_tuple %s11, %s12
  %s14 = sld [smem:[#allocation0]]
  $region62: #{fcn_forward.1} parent=0
    _
  %s16 = ssub.s32 1, %s14
  %s17 = scalar_select 0, %s16, %s14
  $region1: #{fcn_forward.1} parent=0
    #allocation2 [shape = 'u8[1024]{0}', space=vmem, size = 0x400, scoped, tag = 'output window, operand 1, single buffered']
    #allocation3 [shape = 's32[1]{0}', space=sflag, size = 0x4, scoped, tag = 'scoped memory for fcn_forward.1']
    %18 = vsyncpa [#allocation3], 0
    // Predicated region
    $region2: #{fcn_forward.1} parent=1 // pred_check
      _
    $region3: #{fcn_forward.1} parent=1 // pred_check_branch
      %20 = sbr.rel (0) target = $region5
    $region4: #{fcn_forward.1} parent=1 // pred_region
      _
    $region5: #{fcn_forward.1} parent=1 // pred_fallthru
      _
    // Predicated region
    $region6: #{fcn_forward.1} parent=1 // pred_check
      _
    $region7: #{fcn_forward.1} parent=1 // pred_check_branch
      %22 = sbr.rel (0) target = $region9
    $region8: #{fcn_forward.1} parent=1 // pred_region
      _
    $region9: #{fcn_forward.1} parent=1 // pred_fallthru
      _
    // Predicated region
    $region10: #{fcn_forward.1} parent=1 // pred_check
      _
    $region11: #{fcn_forward.1} parent=1 // pred_check_branch
      %24 = sbr.rel (0) target = $region13
    $region12: #{fcn_forward.1} parent=1 // pred_region
      _
    $region13: #{fcn_forward.1} parent=1 // pred_fallthru
      _
    // Predicated region
    $region14: #{fcn_forward.1} parent=1 // pred_check
      _
    $region15: #{fcn_forward.1} parent=1 // pred_check_branch
      %26 = sbr.rel (0) target = $region17
    $region16: #{fcn_forward.1} parent=1 // pred_region
      _
    $region17: #{fcn_forward.1} parent=1 // pred_fallthru
      _
    // Predicated region
    $region18: #{fcn_forward.1} parent=1 // pred_check
      _
    $region19: #{fcn_forward.1} parent=1 // pred_check_branch
      %28 = sbr.rel (0) target = $region21
    $region20: #{fcn_forward.1} parent=1 // pred_region
      _
    $region21: #{fcn_forward.1} parent=1 // pred_fallthru
      _
    // Predicated region
    $region22: #{fcn_forward.1} parent=1 // pred_check
      _
    $region23: #{fcn_forward.1} parent=1 // pred_check_branch
      %30 = sbr.rel (0) target = $region25
    $region24: #{fcn_forward.1} parent=1 // pred_region
      _
    $region25: #{fcn_forward.1} parent=1 // pred_fallthru
      _
    // Predicated region
    $region26: #{fcn_forward.1} parent=1 // pred_check
      _
    $region27: #{fcn_forward.1} parent=1 // pred_check_branch
      %32 = sbr.rel (0) target = $region29
    $region28: #{fcn_forward.1} parent=1 // pred_region
      _
    $region29: #{fcn_forward.1} parent=1 // pred_fallthru
      _
    // Predicated region
    $region30: #{fcn_forward.1} parent=1 // pred_check
      _
    $region31: #{fcn_forward.1} parent=1 // pred_check_branch
      %34 = sbr.rel (0) target = $region33
    $region32: #{fcn_forward.1} parent=1 // pred_region
      _
    $region33: #{fcn_forward.1} parent=1 // pred_fallthru
      _
    // Predicated region
    $region34: #{fcn_forward.1} parent=1 // pred_check
      _
    $region35: #{fcn_forward.1} parent=1 // pred_check_branch
      %36 = sbr.rel (0) target = $region37
    $region36: #{fcn_forward.1} parent=1 // pred_region
      _
    $region37: #{fcn_forward.1} parent=1 // pred_fallthru
      _
    // Predicated region
    $region38: #{fcn_forward.1} parent=1 // pred_check
      _
    $region39: #{fcn_forward.1} parent=1 // pred_check_branch
      %38 = sbr.rel (0) target = $region41
    $region40: #{fcn_forward.1} parent=1 // pred_region
      _
    $region41: #{fcn_forward.1} parent=1 // pred_fallthru
      _
    // Predicated region
    $region42: #{fcn_forward.1} parent=1 // pred_check
      _
    $region43: #{fcn_forward.1} parent=1 // pred_check_branch
      %40 = sbr.rel (0) target = $region45
    $region44: #{fcn_forward.1} parent=1 // pred_region
      _
    $region45: #{fcn_forward.1} parent=1 // pred_fallthru
      _
    %v41 = vld [vmem:[%s1] sm:$0xff]
    %v42 = vld [vmem:[%s1 + $0x8] sm:$0xff]
    %v43 = vld [vmem:[%s2] sm:$0xff]
    %v44 = vld [vmem:[%s2 + $0x8] sm:$0xff]
    %v45 = vld [vmem:[%s0] sm:$0xff]
    %v46 = vld [vmem:[%s0 + $0x8] sm:$0xff]
    %v47 = vld [vmem:[%s0 + $0x10] sm:$0xff]
    %v48 = vld [vmem:[%s0 + $0x18] sm:$0xff]
    %v49 = vld [vmem:[%s0 + $0x20] sm:$0xff]
    %v50 = vld [vmem:[%s0 + $0x28] sm:$0xff]
    %v51 = vld [vmem:[%s0 + $0x30] sm:$0xff]
    %v52 = vld [vmem:[%s0 + $0x38] sm:$0xff]
    %vm53 = vcmask 130048
    %v55 = vsel %vm53, %v41, 0
    %v58 = vsel %vm53, %v42, 0
    %60 = vmatprep.subr.mxu0 %v46
    %61 = vmatpush1.msra.mxu0 %v45
    %62 = vmatprep.subr.mxu0 %v50
    %63 = vmatpush1.msra.mxu0 %v49
    %64 = vmatprep.subr.mxu0 0.0
    %65 = vmatpush1.msra.mxu0 0.0
    %66 = vmatprep.subr.mxu0 0.0
    %67 = vmatpush1.msra.mxu0 0.0
    %68 = vmatprep.subr.mxu0 0.0
    %69 = vmatpush1.msra.mxu0 0.0
    %70 = vmatprep.subr.mxu0 0.0
    %71 = vmatpush1.msra.mxu0 0.0
    %72 = vmatprep.subr.mxu0 0.0
    %73 = vmatpush1.msra.mxu0 0.0
    %74 = vmatprep.subr.mxu0 0.0
    %75 = vmatpush1.msra.mxu0 0.0
    %76 = vmatprep.subr.mxu0 0.0
    %77 = vmatpush1.msra.mxu0 0.0
    %78 = vmatprep.subr.mxu0 0.0
    %79 = vmatpush1.msra.mxu0 0.0
    %80 = vmatprep.subr.mxu0 0.0
    %81 = vmatpush1.msra.mxu0 0.0
    %82 = vmatprep.subr.mxu0 0.0
    %83 = vmatpush1.msra.mxu0 0.0
    %84 = vmatprep.subr.mxu0 0.0
    %85 = vmatpush1.msra.mxu0 0.0
    %86 = vmatprep.subr.mxu0 0.0
    %87 = vmatpush1.msra.mxu0 0.0
    %88 = vmatprep.subr.mxu0 0.0
    %89 = vmatpush1.msra.mxu0 0.0
    %90 = vmatprep.subr.mxu0 0.0
    %91 = vmatpush1.msra.mxu0 0.0
    %92 = vmatprep.subr.mxu0 0.0
    %93 = vmatpush1.msra.mxu0 0.0
    %94 = vmatprep.subr.mxu0 0.0
    %95 = vmatpush1.msra.mxu0 0.0
    %96 = vmatprep.subr.mxu0 0.0
    %97 = vmatpush1.msra.mxu0 0.0
    %98 = vmatprep.subr.mxu0 0.0
    %99 = vmatpush1.msra.mxu0 0.0
    %100 = vmatprep.subr.mxu0 0.0
    %101 = vmatpush1.msra.mxu0 0.0
    %102 = vmatprep.subr.mxu0 0.0
    %103 = vmatpush1.msra.mxu0 0.0
    %104 = vmatprep.subr.mxu0 0.0
    %105 = vmatpush1.msra.mxu0 0.0
    %106 = vmatprep.subr.mxu0 0.0
    %107 = vmatpush1.msra.mxu0 0.0
    %108 = vmatprep.subr.mxu0 0.0
    %109 = vmatpush1.msra.mxu0 0.0
    %110 = vmatprep.subr.mxu0 0.0
    %111 = vmatpush1.msra.mxu0 0.0
    %112 = vmatprep.subr.mxu0 0.0
    %113 = vmatpush1.msra.mxu0 0.0
    %114 = vmatprep.subr.mxu0 0.0
    %115 = vmatpush1.msra.mxu0 0.0
    %116 = vmatprep.subr.mxu0 0.0
    %117 = vmatpush1.msra.mxu0 0.0
    %118 = vmatprep.subr.mxu0 0.0
    %119 = vmatpush1.msra.mxu0 0.0
    %120 = vmatprep.subr.mxu0 0.0
    %121 = vmatpush1.msra.mxu0 0.0
    %122 = vmatprep.subr.mxu0 0.0
    %123 = vmatpush1.msra.mxu0 0.0
    %124 = vmatprep.mubr.f32.mxu0 0.0
    %125 = vmatmul.mubr.f32.gmra.mrb[0].mxu0 %v55
    %v126 = vpop.f32.mrb[0].mxu0
    %v127 = vadd.f32 0.0, %v126
    %v128 = vpop.f32.mrb[0].mxu0
    %v129 = vadd.f32 0.0, %v128
    %130 = vmatprep.mubr.f32.mxu0 0.0
    %131 = vmatmul.mubr.f32.gmra.mrb[0].mxu0 %v58
    %v132 = vpop.f32.mrb[0].mxu0
    %v133 = vadd.f32 0.0, %v132
    %v134 = vpop.f32.mrb[0].mxu0
    %v135 = vadd.f32 0.0, %v134
    %136 = vdwg.mxu0
    %137 = vmatprep.subr.mxu0 %v48
    %138 = vmatpush1.msra.mxu0 %v47
    %139 = vmatprep.subr.mxu0 %v52
    %140 = vmatpush1.msra.mxu0 %v51
    %141 = vmatprep.subr.mxu0 0.0
    %142 = vmatpush1.msra.mxu0 0.0
    %143 = vmatprep.subr.mxu0 0.0
    %144 = vmatpush1.msra.mxu0 0.0
    %145 = vmatprep.subr.mxu0 0.0
    %146 = vmatpush1.msra.mxu0 0.0
    %147 = vmatprep.subr.mxu0 0.0
    %148 = vmatpush1.msra.mxu0 0.0
    %149 = vmatprep.subr.mxu0 0.0
    %150 = vmatpush1.msra.mxu0 0.0
    %151 = vmatprep.subr.mxu0 0.0
    %152 = vmatpush1.msra.mxu0 0.0
    %153 = vmatprep.subr.mxu0 0.0
    %154 = vmatpush1.msra.mxu0 0.0
    %155 = vmatprep.subr.mxu0 0.0
    %156 = vmatpush1.msra.mxu0 0.0
    %157 = vmatprep.subr.mxu0 0.0
    %158 = vmatpush1.msra.mxu0 0.0
    %159 = vmatprep.subr.mxu0 0.0
    %160 = vmatpush1.msra.mxu0 0.0
    %161 = vmatprep.subr.mxu0 0.0
    %162 = vmatpush1.msra.mxu0 0.0
    %163 = vmatprep.subr.mxu0 0.0
    %164 = vmatpush1.msra.mxu0 0.0
    %165 = vmatprep.subr.mxu0 0.0
    %166 = vmatpush1.msra.mxu0 0.0
    %167 = vmatprep.subr.mxu0 0.0
    %168 = vmatpush1.msra.mxu0 0.0
    %169 = vmatprep.subr.mxu0 0.0
    %170 = vmatpush1.msra.mxu0 0.0
    %171 = vmatprep.subr.mxu0 0.0
    %172 = vmatpush1.msra.mxu0 0.0
    %173 = vmatprep.subr.mxu0 0.0
    %174 = vmatpush1.msra.mxu0 0.0
    %175 = vmatprep.subr.mxu0 0.0
    %176 = vmatpush1.msra.mxu0 0.0
    %177 = vmatprep.subr.mxu0 0.0
    %178 = vmatpush1.msra.mxu0 0.0
    %179 = vmatprep.subr.mxu0 0.0
    %180 = vmatpush1.msra.mxu0 0.0
    %181 = vmatprep.subr.mxu0 0.0
    %182 = vmatpush1.msra.mxu0 0.0
    %183 = vmatprep.subr.mxu0 0.0
    %184 = vmatpush1.msra.mxu0 0.0
    %185 = vmatprep.subr.mxu0 0.0
    %186 = vmatpush1.msra.mxu0 0.0
    %187 = vmatprep.subr.mxu0 0.0
    %188 = vmatpush1.msra.mxu0 0.0
    %189 = vmatprep.subr.mxu0 0.0
    %190 = vmatpush1.msra.mxu0 0.0
    %191 = vmatprep.subr.mxu0 0.0
    %192 = vmatpush1.msra.mxu0 0.0
    %193 = vmatprep.subr.mxu0 0.0
    %194 = vmatpush1.msra.mxu0 0.0
    %195 = vmatprep.subr.mxu0 0.0
    %196 = vmatpush1.msra.mxu0 0.0
    %197 = vmatprep.subr.mxu0 0.0
    %198 = vmatpush1.msra.mxu0 0.0
    %199 = vmatprep.subr.mxu0 0.0
    %200 = vmatpush1.msra.mxu0 0.0
    %201 = vmatprep.mubr.f32.mxu0 0.0
    %202 = vmatmul.mubr.f32.gmra.mrb[0].mxu0 %v55
    %v203 = vpop.f32.mrb[0].mxu0
    %v204 = vadd.f32 0.0, %v203
    %v205 = vpop.f32.mrb[0].mxu0
    %v206 = vadd.f32 0.0, %v205
    %207 = vmatprep.mubr.f32.mxu0 0.0
    %208 = vmatmul.mubr.f32.gmra.mrb[0].mxu0 %v58
    %v209 = vpop.f32.mrb[0].mxu0
    %v210 = vadd.f32 0.0, %v209
    %v211 = vpop.f32.mrb[0].mxu0
    %v212 = vadd.f32 0.0, %v211
    %213 = vdwg.mxu0
    %v214 = vmax.f32 %v127, %v129
    %v215 = vmax.f32 %v133, %v135
    %v216 = vmax.f32 %v204, %v206
    %v217 = vmax.f32 %v210, %v212
    %v218 = vmax.f32 %v214, %v216
    %v219 = vmax.f32 %v215, %v217
    %221 = vset.pattern.permute.xlu0 0
    %222 = vperm.xlu0 %221, %v43
    %v223 = vpop.permute.xlu0 %222
    %226 = vset.pattern.permute.xlu0 0
    %227 = vperm.xlu0 %226, %v44
    %v228 = vpop.permute.xlu0 %227
    %v230 = vadd.f32 %v218, %v223
    %v231 = vadd.f32 %v219, %v228
    %v232 = vmax.f32 %v230, 0.0
    %v233 = vmax.f32 %v231, 0.0
    %s234 = scalar_lea.vmem %s0, 64
    %v235 = vld [vmem:[%s234] sm:$0xff]
    %v236 = vld [vmem:[%s234 + $0x8] sm:$0xff]
    %v237 = vld [vmem:[%s234 + $0x10] sm:$0xff]
    %v238 = vld [vmem:[%s234 + $0x18] sm:$0xff]
    %v239 = vld [vmem:[%s234 + $0x20] sm:$0xff]
    %v240 = vld [vmem:[%s234 + $0x28] sm:$0xff]
    %v241 = vld [vmem:[%s234 + $0x30] sm:$0xff]
    %v242 = vld [vmem:[%s234 + $0x38] sm:$0xff]
    %243 = vmatprep.subr.mxu0 %v236
    %244 = vmatpush1.msra.mxu0 %v235
    %245 = vmatprep.subr.mxu0 %v240
    %246 = vmatpush1.msra.mxu0 %v239
    %247 = vmatprep.subr.mxu0 0.0
    %248 = vmatpush1.msra.mxu0 0.0
    %249 = vmatprep.subr.mxu0 0.0
    %250 = vmatpush1.msra.mxu0 0.0
    %251 = vmatprep.subr.mxu0 0.0
    %252 = vmatpush1.msra.mxu0 0.0
    %253 = vmatprep.subr.mxu0 0.0
    %254 = vmatpush1.msra.mxu0 0.0
    %255 = vmatprep.subr.mxu0 0.0
    %256 = vmatpush1.msra.mxu0 0.0
    %257 = vmatprep.subr.mxu0 0.0
    %258 = vmatpush1.msra.mxu0 0.0
    %259 = vmatprep.subr.mxu0 0.0
    %260 = vmatpush1.msra.mxu0 0.0
    %261 = vmatprep.subr.mxu0 0.0
    %262 = vmatpush1.msra.mxu0 0.0
    %263 = vmatprep.subr.mxu0 0.0
    %264 = vmatpush1.msra.mxu0 0.0
    %265 = vmatprep.subr.mxu0 0.0
    %266 = vmatpush1.msra.mxu0 0.0
    %267 = vmatprep.subr.mxu0 0.0
    %268 = vmatpush1.msra.mxu0 0.0
    %269 = vmatprep.subr.mxu0 0.0
    %270 = vmatpush1.msra.mxu0 0.0
    %271 = vmatprep.subr.mxu0 0.0
    %272 = vmatpush1.msra.mxu0 0.0
    %273 = vmatprep.subr.mxu0 0.0
    %274 = vmatpush1.msra.mxu0 0.0
    %275 = vmatprep.subr.mxu0 0.0
    %276 = vmatpush1.msra.mxu0 0.0
    %277 = vmatprep.subr.mxu0 0.0
    %278 = vmatpush1.msra.mxu0 0.0
    %279 = vmatprep.subr.mxu0 0.0
    %280 = vmatpush1.msra.mxu0 0.0
    %281 = vmatprep.subr.mxu0 0.0
    %282 = vmatpush1.msra.mxu0 0.0
    %283 = vmatprep.subr.mxu0 0.0
    %284 = vmatpush1.msra.mxu0 0.0
    %285 = vmatprep.subr.mxu0 0.0
    %286 = vmatpush1.msra.mxu0 0.0
    %287 = vmatprep.subr.mxu0 0.0
    %288 = vmatpush1.msra.mxu0 0.0
    %289 = vmatprep.subr.mxu0 0.0
    %290 = vmatpush1.msra.mxu0 0.0
    %291 = vmatprep.subr.mxu0 0.0
    %292 = vmatpush1.msra.mxu0 0.0
    %293 = vmatprep.subr.mxu0 0.0
    %294 = vmatpush1.msra.mxu0 0.0
    %295 = vmatprep.subr.mxu0 0.0
    %296 = vmatpush1.msra.mxu0 0.0
    %297 = vmatprep.subr.mxu0 0.0
    %298 = vmatpush1.msra.mxu0 0.0
    %299 = vmatprep.subr.mxu0 0.0
    %300 = vmatpush1.msra.mxu0 0.0
    %301 = vmatprep.subr.mxu0 0.0
    %302 = vmatpush1.msra.mxu0 0.0
    %303 = vmatprep.subr.mxu0 0.0
    %304 = vmatpush1.msra.mxu0 0.0
    %305 = vmatprep.subr.mxu0 0.0
    %306 = vmatpush1.msra.mxu0 0.0
    %307 = vmatprep.mubr.f32.mxu0 0.0
    %308 = vmatmul.mubr.f32.gmra.mrb[0].mxu0 %v55
    %v309 = vpop.f32.mrb[0].mxu0
    %v310 = vadd.f32 0.0, %v309
    %v311 = vpop.f32.mrb[0].mxu0
    %v312 = vadd.f32 0.0, %v311
    %313 = vmatprep.mubr.f32.mxu0 0.0
    %314 = vmatmul.mubr.f32.gmra.mrb[0].mxu0 %v58
    %v315 = vpop.f32.mrb[0].mxu0
    %v316 = vadd.f32 0.0, %v315
    %v317 = vpop.f32.mrb[0].mxu0
    %v318 = vadd.f32 0.0, %v317
    %319 = vdwg.mxu0
    %320 = vmatprep.subr.mxu0 %v238
    %321 = vmatpush1.msra.mxu0 %v237
    %322 = vmatprep.subr.mxu0 %v242
    %323 = vmatpush1.msra.mxu0 %v241
    %324 = vmatprep.subr.mxu0 0.0
    %325 = vmatpush1.msra.mxu0 0.0
    %326 = vmatprep.subr.mxu0 0.0
    %327 = vmatpush1.msra.mxu0 0.0
    %328 = vmatprep.subr.mxu0 0.0
    %329 = vmatpush1.msra.mxu0 0.0
    %330 = vmatprep.subr.mxu0 0.0
    %331 = vmatpush1.msra.mxu0 0.0
    %332 = vmatprep.subr.mxu0 0.0
    %333 = vmatpush1.msra.mxu0 0.0
    %334 = vmatprep.subr.mxu0 0.0
    %335 = vmatpush1.msra.mxu0 0.0
    %336 = vmatprep.subr.mxu0 0.0
    %337 = vmatpush1.msra.mxu0 0.0
    %338 = vmatprep.subr.mxu0 0.0
    %339 = vmatpush1.msra.mxu0 0.0
    %340 = vmatprep.subr.mxu0 0.0
    %341 = vmatpush1.msra.mxu0 0.0
    %342 = vmatprep.subr.mxu0 0.0
    %343 = vmatpush1.msra.mxu0 0.0
    %344 = vmatprep.subr.mxu0 0.0
    %345 = vmatpush1.msra.mxu0 0.0
    %346 = vmatprep.subr.mxu0 0.0
    %347 = vmatpush1.msra.mxu0 0.0
    %348 = vmatprep.subr.mxu0 0.0
    %349 = vmatpush1.msra.mxu0 0.0
    %350 = vmatprep.subr.mxu0 0.0
    %351 = vmatpush1.msra.mxu0 0.0
    %352 = vmatprep.subr.mxu0 0.0
    %353 = vmatpush1.msra.mxu0 0.0
    %354 = vmatprep.subr.mxu0 0.0
    %355 = vmatpush1.msra.mxu0 0.0
    %356 = vmatprep.subr.mxu0 0.0
    %357 = vmatpush1.msra.mxu0 0.0
    %358 = vmatprep.subr.mxu0 0.0
    %359 = vmatpush1.msra.mxu0 0.0
    %360 = vmatprep.subr.mxu0 0.0
    %361 = vmatpush1.msra.mxu0 0.0
    %362 = vmatprep.subr.mxu0 0.0
    %363 = vmatpush1.msra.mxu0 0.0
    %364 = vmatprep.subr.mxu0 0.0
    %365 = vmatpush1.msra.mxu0 0.0
    %366 = vmatprep.subr.mxu0 0.0
    %367 = vmatpush1.msra.mxu0 0.0
    %368 = vmatprep.subr.mxu0 0.0
    %369 = vmatpush1.msra.mxu0 0.0
    %370 = vmatprep.subr.mxu0 0.0
    %371 = vmatpush1.msra.mxu0 0.0
    %372 = vmatprep.subr.mxu0 0.0
    %373 = vmatpush1.msra.mxu0 0.0
    %374 = vmatprep.subr.mxu0 0.0
    %375 = vmatpush1.msra.mxu0 0.0
    %376 = vmatprep.subr.mxu0 0.0
    %377 = vmatpush1.msra.mxu0 0.0
    %378 = vmatprep.subr.mxu0 0.0
    %379 = vmatpush1.msra.mxu0 0.0
    %380 = vmatprep.subr.mxu0 0.0
    %381 = vmatpush1.msra.mxu0 0.0
    %382 = vmatprep.subr.mxu0 0.0
    %383 = vmatpush1.msra.mxu0 0.0
    %384 = vmatprep.mubr.f32.mxu0 0.0
    %385 = vmatmul.mubr.f32.gmra.mrb[0].mxu0 %v55
    %v386 = vpop.f32.mrb[0].mxu0
    %v387 = vadd.f32 0.0, %v386
    %v388 = vpop.f32.mrb[0].mxu0
    %v389 = vadd.f32 0.0, %v388
    %390 = vmatprep.mubr.f32.mxu0 0.0
    %391 = vmatmul.mubr.f32.gmra.mrb[0].mxu0 %v58
    %v392 = vpop.f32.mrb[0].mxu0
    %v393 = vadd.f32 0.0, %v392
    %v394 = vpop.f32.mrb[0].mxu0
    %v395 = vadd.f32 0.0, %v394
    %396 = vdwg.mxu0
    %v397 = vmax.f32 %v310, %v312
    %v398 = vmax.f32 %v316, %v318
    %v399 = vmax.f32 %v387, %v389
    %v400 = vmax.f32 %v393, %v395
    %v401 = vmax.f32 %v397, %v399
    %v402 = vmax.f32 %v398, %v400
    %v403 = vadd.f32 %v401, %v223
    %v404 = vadd.f32 %v402, %v228
    %v405 = vmax.f32 %v403, 0.0
    %v406 = vmax.f32 %v404, 0.0
    %v408 = vrot.slane %v405, 7
    %vm410 = vcmask 1040384
    %v411 = vsel %vm410, %v232, %v408
    %v412 = vld [vmem:[%s3] sm:$0xff]
    %v413 = vld [vmem:[%s3 + $0x8] sm:$0xff]
    %v414 = vld [vmem:[%s3 + $0x10] sm:$0xff]
    %v415 = vld [vmem:[%s3 + $0x18] sm:$0xff]
    %v416 = vld [vmem:[%s3 + $0x20] sm:$0xff]
    %v417 = vld [vmem:[%s3 + $0x28] sm:$0xff]
    %v418 = vld [vmem:[%s3 + $0x30] sm:$0xff]
    %v419 = vld [vmem:[%s3 + $0x38] sm:$0xff]
    %v420 = vld [vmem:[%s3 + $0x40] sm:$0xff]
    %v421 = vld [vmem:[%s3 + $0x48] sm:$0xff]
    %v422 = vld [vmem:[%s3 + $0x50] sm:$0xff]
    %v423 = vld [vmem:[%s3 + $0x58] sm:$0xff]
    %v424 = vld [vmem:[%s3 + $0x60] sm:$0xff]
    %v425 = vld [vmem:[%s3 + $0x68] sm:$0xff]
    %v426 = vld [vmem:[%s3 + $0x70] sm:$0xff]
    %v427 = vld [vmem:[%s3 + $0x78] sm:$0xff]
    %v429 = vrot.slane %v232, 1
    %v431 = vsel %vm410, %v429, %v405
    %s432 = scalar_lea.vmem %s3, 128
    %v433 = vld [vmem:[%s432] sm:$0xff]
    %v434 = vld [vmem:[%s432 + $0x8] sm:$0xff]
    %v435 = vld [vmem:[%s432 + $0x10] sm:$0xff]
    %v436 = vld [vmem:[%s432 + $0x18] sm:$0xff]
    %v437 = vld [vmem:[%s432 + $0x20] sm:$0xff]
    %v438 = vld [vmem:[%s432 + $0x28] sm:$0xff]
    %v439 = vld [vmem:[%s432 + $0x30] sm:$0xff]
    %v440 = vld [vmem:[%s432 + $0x38] sm:$0xff]
    %v441 = vld [vmem:[%s432 + $0x40] sm:$0xff]
    %v442 = vld [vmem:[%s432 + $0x48] sm:$0xff]
    %v443 = vld [vmem:[%s432 + $0x50] sm:$0xff]
    %v444 = vld [vmem:[%s432 + $0x58] sm:$0xff]
    %v445 = vld [vmem:[%s432 + $0x60] sm:$0xff]
    %v446 = vld [vmem:[%s432 + $0x68] sm:$0xff]
    %v447 = vld [vmem:[%s432 + $0x70] sm:$0xff]
    %v448 = vld [vmem:[%s432 + $0x78] sm:$0xff]
    %449 = vmatprep.subr.mxu0 0.0
    %450 = vmatpush1.msra.mxu0 %v433
    %451 = vmatprep.subr.mxu0 0.0
    %452 = vmatpush1.msra.mxu0 %v434
    %453 = vmatprep.subr.mxu0 0.0
    %454 = vmatpush1.msra.mxu0 %v435
    %455 = vmatprep.subr.mxu0 0.0
    %456 = vmatpush1.msra.mxu0 %v436
    %457 = vmatprep.subr.mxu0 0.0
    %458 = vmatpush1.msra.mxu0 %v437
    %459 = vmatprep.subr.mxu0 0.0
    %460 = vmatpush1.msra.mxu0 %v438
    %461 = vmatprep.subr.mxu0 0.0
    %462 = vmatpush1.msra.mxu0 %v439
    %463 = vmatprep.subr.mxu0 0.0
    %464 = vmatpush1.msra.mxu0 %v440
    %465 = vmatprep.subr.mxu0 0.0
    %466 = vmatpush1.msra.mxu0 %v441
    %467 = vmatprep.subr.mxu0 0.0
    %468 = vmatpush1.msra.mxu0 %v442
    %469 = vmatprep.subr.mxu0 0.0
    %470 = vmatpush1.msra.mxu0 %v443
    %471 = vmatprep.subr.mxu0 0.0
    %472 = vmatpush1.msra.mxu0 %v444
    %473 = vmatprep.subr.mxu0 0.0
    %474 = vmatpush1.msra.mxu0 %v445
    %475 = vmatprep.subr.mxu0 0.0
    %476 = vmatpush1.msra.mxu0 %v446
    %477 = vmatprep.subr.mxu0 0.0
    %478 = vmatpush1.msra.mxu0 %v447
    %479 = vmatprep.subr.mxu0 0.0
    %480 = vmatpush1.msra.mxu0 %v448
    %481 = vmatprep.subr.mxu0 0.0
    %482 = vmatpush1.msra.mxu0 0.0
    %483 = vmatprep.subr.mxu0 0.0
    %484 = vmatpush1.msra.mxu0 0.0
    %485 = vmatprep.subr.mxu0 0.0
    %486 = vmatpush1.msra.mxu0 0.0
    %487 = vmatprep.subr.mxu0 0.0
    %488 = vmatpush1.msra.mxu0 0.0
    %489 = vmatprep.subr.mxu0 0.0
    %490 = vmatpush1.msra.mxu0 0.0
    %491 = vmatprep.subr.mxu0 0.0
    %492 = vmatpush1.msra.mxu0 0.0
    %493 = vmatprep.subr.mxu0 0.0
    %494 = vmatpush1.msra.mxu0 0.0
    %495 = vmatprep.subr.mxu0 0.0
    %496 = vmatpush1.msra.mxu0 0.0
    %497 = vmatprep.subr.mxu0 0.0
    %498 = vmatpush1.msra.mxu0 0.0
    %499 = vmatprep.subr.mxu0 0.0
    %500 = vmatpush1.msra.mxu0 0.0
    %501 = vmatprep.subr.mxu0 0.0
    %502 = vmatpush1.msra.mxu0 0.0
    %503 = vmatprep.subr.mxu0 0.0
    %504 = vmatpush1.msra.mxu0 0.0
    %505 = vmatprep.subr.mxu0 0.0
    %506 = vmatpush1.msra.mxu0 0.0
    %507 = vmatprep.subr.mxu0 0.0
    %508 = vmatpush1.msra.mxu0 0.0
    %509 = vmatprep.subr.mxu0 0.0
    %510 = vmatpush1.msra.mxu0 0.0
    %511 = vmatprep.subr.mxu0 0.0
    %512 = vmatpush1.msra.mxu0 0.0
    %513 = vmatprep.mubr.f32.mxu0 0.0
    %514 = vmatmul.mubr.f32.gmra.mrb[0].mxu0 %v431
    %v515 = vpop.f32.mrb[0].mxu0
    %v516 = vadd.f32 0.0, %v515
    %v517 = vpop.f32.mrb[0].mxu0
    %518 = vdwg.mxu0
    %519 = vmatprep.subr.mxu0 0.0
    %520 = vmatpush1.msra.mxu0 %v412
    %521 = vmatprep.subr.mxu0 0.0
    %522 = vmatpush1.msra.mxu0 %v413
    %523 = vmatprep.subr.mxu0 0.0
    %524 = vmatpush1.msra.mxu0 %v414
    %525 = vmatprep.subr.mxu0 0.0
    %526 = vmatpush1.msra.mxu0 %v415
    %527 = vmatprep.subr.mxu0 0.0
    %528 = vmatpush1.msra.mxu0 %v416
    %529 = vmatprep.subr.mxu0 0.0
    %530 = vmatpush1.msra.mxu0 %v417
    %531 = vmatprep.subr.mxu0 0.0
    %532 = vmatpush1.msra.mxu0 %v418
    %533 = vmatprep.subr.mxu0 0.0
    %534 = vmatpush1.msra.mxu0 %v419
    %535 = vmatprep.subr.mxu0 0.0
    %536 = vmatpush1.msra.mxu0 %v420
    %537 = vmatprep.subr.mxu0 0.0
    %538 = vmatpush1.msra.mxu0 %v421
    %539 = vmatprep.subr.mxu0 0.0
    %540 = vmatpush1.msra.mxu0 %v422
    %541 = vmatprep.subr.mxu0 0.0
    %542 = vmatpush1.msra.mxu0 %v423
    %543 = vmatprep.subr.mxu0 0.0
    %544 = vmatpush1.msra.mxu0 %v424
    %545 = vmatprep.subr.mxu0 0.0
    %546 = vmatpush1.msra.mxu0 %v425
    %547 = vmatprep.subr.mxu0 0.0
    %548 = vmatpush1.msra.mxu0 %v426
    %549 = vmatprep.subr.mxu0 0.0
    %550 = vmatpush1.msra.mxu0 %v427
    %551 = vmatprep.subr.mxu0 0.0
    %552 = vmatpush1.msra.mxu0 0.0
    %553 = vmatprep.subr.mxu0 0.0
    %554 = vmatpush1.msra.mxu0 0.0
    %555 = vmatprep.subr.mxu0 0.0
    %556 = vmatpush1.msra.mxu0 0.0
    %557 = vmatprep.subr.mxu0 0.0
    %558 = vmatpush1.msra.mxu0 0.0
    %559 = vmatprep.subr.mxu0 0.0
    %560 = vmatpush1.msra.mxu0 0.0
    %561 = vmatprep.subr.mxu0 0.0
    %562 = vmatpush1.msra.mxu0 0.0
    %563 = vmatprep.subr.mxu0 0.0
    %564 = vmatpush1.msra.mxu0 0.0
    %565 = vmatprep.subr.mxu0 0.0
    %566 = vmatpush1.msra.mxu0 0.0
    %567 = vmatprep.subr.mxu0 0.0
    %568 = vmatpush1.msra.mxu0 0.0
    %569 = vmatprep.subr.mxu0 0.0
    %570 = vmatpush1.msra.mxu0 0.0
    %571 = vmatprep.subr.mxu0 0.0
    %572 = vmatpush1.msra.mxu0 0.0
    %573 = vmatprep.subr.mxu0 0.0
    %574 = vmatpush1.msra.mxu0 0.0
    %575 = vmatprep.subr.mxu0 0.0
    %576 = vmatpush1.msra.mxu0 0.0
    %577 = vmatprep.subr.mxu0 0.0
    %578 = vmatpush1.msra.mxu0 0.0
    %579 = vmatprep.subr.mxu0 0.0
    %580 = vmatpush1.msra.mxu0 0.0
    %581 = vmatprep.subr.mxu0 0.0
    %582 = vmatpush1.msra.mxu0 0.0
    %583 = vmatprep.mubr.f32.mxu0 0.0
    %584 = vmatmul.mubr.f32.gmra.mrb[0].mxu0 %v411
    %v585 = vpop.f32.mrb[0].mxu0
    %v586 = vadd.f32 %v516, %v585
    %v587 = vpop.f32.mrb[0].mxu0
    %588 = vdwg.mxu0
    %v589 = vrot.slane %v232, 2
    %v591 = vrot.slane %v405, 1
    %v593 = vsel %vm410, %v589, %v591
    %s594 = scalar_lea.vmem %s3, 256
    %v595 = vld [vmem:[%s594] sm:$0xff]
    %v596 = vld [vmem:[%s594 + $0x8] sm:$0xff]
    %v597 = vld [vmem:[%s594 + $0x10] sm:$0xff]
    %v598 = vld [vmem:[%s594 + $0x18] sm:$0xff]
    %v599 = vld [vmem:[%s594 + $0x20] sm:$0xff]
    %v600 = vld [vmem:[%s594 + $0x28] sm:$0xff]
    %v601 = vld [vmem:[%s594 + $0x30] sm:$0xff]
    %v602 = vld [vmem:[%s594 + $0x38] sm:$0xff]
    %v603 = vld [vmem:[%s594 + $0x40] sm:$0xff]
    %v604 = vld [vmem:[%s594 + $0x48] sm:$0xff]
    %v605 = vld [vmem:[%s594 + $0x50] sm:$0xff]
    %v606 = vld [vmem:[%s594 + $0x58] sm:$0xff]
    %v607 = vld [vmem:[%s594 + $0x60] sm:$0xff]
    %v608 = vld [vmem:[%s594 + $0x68] sm:$0xff]
    %v609 = vld [vmem:[%s594 + $0x70] sm:$0xff]
    %v610 = vld [vmem:[%s594 + $0x78] sm:$0xff]
    %611 = vmatprep.subr.mxu0 0.0
    %612 = vmatpush1.msra.mxu0 %v595
    %613 = vmatprep.subr.mxu0 0.0
    %614 = vmatpush1.msra.mxu0 %v596
    %615 = vmatprep.subr.mxu0 0.0
    %616 = vmatpush1.msra.mxu0 %v597
    %617 = vmatprep.subr.mxu0 0.0
    %618 = vmatpush1.msra.mxu0 %v598
    %619 = vmatprep.subr.mxu0 0.0
    %620 = vmatpush1.msra.mxu0 %v599
    %621 = vmatprep.subr.mxu0 0.0
    %622 = vmatpush1.msra.mxu0 %v600
    %623 = vmatprep.subr.mxu0 0.0
    %624 = vmatpush1.msra.mxu0 %v601
    %625 = vmatprep.subr.mxu0 0.0
    %626 = vmatpush1.msra.mxu0 %v602
    %627 = vmatprep.subr.mxu0 0.0
    %628 = vmatpush1.msra.mxu0 %v603
    %629 = vmatprep.subr.mxu0 0.0
    %630 = vmatpush1.msra.mxu0 %v604
    %631 = vmatprep.subr.mxu0 0.0
    %632 = vmatpush1.msra.mxu0 %v605
    %633 = vmatprep.subr.mxu0 0.0
    %634 = vmatpush1.msra.mxu0 %v606
    %635 = vmatprep.subr.mxu0 0.0
    %636 = vmatpush1.msra.mxu0 %v607
    %637 = vmatprep.subr.mxu0 0.0
    %638 = vmatpush1.msra.mxu0 %v608
    %639 = vmatprep.subr.mxu0 0.0
    %640 = vmatpush1.msra.mxu0 %v609
    %641 = vmatprep.subr.mxu0 0.0
    %642 = vmatpush1.msra.mxu0 %v610
    %643 = vmatprep.subr.mxu0 0.0
    %644 = vmatpush1.msra.mxu0 0.0
    %645 = vmatprep.subr.mxu0 0.0
    %646 = vmatpush1.msra.mxu0 0.0
    %647 = vmatprep.subr.mxu0 0.0
    %648 = vmatpush1.msra.mxu0 0.0
    %649 = vmatprep.subr.mxu0 0.0
    %650 = vmatpush1.msra.mxu0 0.0
    %651 = vmatprep.subr.mxu0 0.0
    %652 = vmatpush1.msra.mxu0 0.0
    %653 = vmatprep.subr.mxu0 0.0
    %654 = vmatpush1.msra.mxu0 0.0
    %655 = vmatprep.subr.mxu0 0.0
    %656 = vmatpush1.msra.mxu0 0.0
    %657 = vmatprep.subr.mxu0 0.0
    %658 = vmatpush1.msra.mxu0 0.0
    %659 = vmatprep.subr.mxu0 0.0
    %660 = vmatpush1.msra.mxu0 0.0
    %661 = vmatprep.subr.mxu0 0.0
    %662 = vmatpush1.msra.mxu0 0.0
    %663 = vmatprep.subr.mxu0 0.0
    %664 = vmatpush1.msra.mxu0 0.0
    %665 = vmatprep.subr.mxu0 0.0
    %666 = vmatpush1.msra.mxu0 0.0
    %667 = vmatprep.subr.mxu0 0.0
    %668 = vmatpush1.msra.mxu0 0.0
    %669 = vmatprep.subr.mxu0 0.0
    %670 = vmatpush1.msra.mxu0 0.0
    %671 = vmatprep.subr.mxu0 0.0
    %672 = vmatpush1.msra.mxu0 0.0
    %673 = vmatprep.subr.mxu0 0.0
    %674 = vmatpush1.msra.mxu0 0.0
    %675 = vmatprep.mubr.f32.mxu0 0.0
    %676 = vmatmul.mubr.f32.gmra.mrb[0].mxu0 %v593
    %v677 = vpop.f32.mrb[0].mxu0
    %v678 = vadd.f32 0.0, %v677
    %v679 = vpop.f32.mrb[0].mxu0
    %680 = vdwg.mxu0
    %v681 = vadd.f32 %v586, %v678
    %v682 = vrot.slane %v232, 3
    %v684 = vrot.slane %v405, 2
    %v686 = vsel %vm410, %v682, %v684
    %s687 = scalar_lea.vmem %s3, 384
    %v688 = vld [vmem:[%s687] sm:$0xff]
    %v689 = vld [vmem:[%s687 + $0x8] sm:$0xff]
    %v690 = vld [vmem:[%s687 + $0x10] sm:$0xff]
    %v691 = vld [vmem:[%s687 + $0x18] sm:$0xff]
    %v692 = vld [vmem:[%s687 + $0x20] sm:$0xff]
    %v693 = vld [vmem:[%s687 + $0x28] sm:$0xff]
    %v694 = vld [vmem:[%s687 + $0x30] sm:$0xff]
    %v695 = vld [vmem:[%s687 + $0x38] sm:$0xff]
    %v696 = vld [vmem:[%s687 + $0x40] sm:$0xff]
    %v697 = vld [vmem:[%s687 + $0x48] sm:$0xff]
    %v698 = vld [vmem:[%s687 + $0x50] sm:$0xff]
    %v699 = vld [vmem:[%s687 + $0x58] sm:$0xff]
    %v700 = vld [vmem:[%s687 + $0x60] sm:$0xff]
    %v701 = vld [vmem:[%s687 + $0x68] sm:$0xff]
    %v702 = vld [vmem:[%s687 + $0x70] sm:$0xff]
    %v703 = vld [vmem:[%s687 + $0x78] sm:$0xff]
    %704 = vmatprep.subr.mxu0 0.0
    %705 = vmatpush1.msra.mxu0 %v688
    %706 = vmatprep.subr.mxu0 0.0
    %707 = vmatpush1.msra.mxu0 %v689
    %708 = vmatprep.subr.mxu0 0.0
    %709 = vmatpush1.msra.mxu0 %v690
    %710 = vmatprep.subr.mxu0 0.0
    %711 = vmatpush1.msra.mxu0 %v691
    %712 = vmatprep.subr.mxu0 0.0
    %713 = vmatpush1.msra.mxu0 %v692
    %714 = vmatprep.subr.mxu0 0.0
    %715 = vmatpush1.msra.mxu0 %v693
    %716 = vmatprep.subr.mxu0 0.0
    %717 = vmatpush1.msra.mxu0 %v694
    %718 = vmatprep.subr.mxu0 0.0
    %719 = vmatpush1.msra.mxu0 %v695
    %720 = vmatprep.subr.mxu0 0.0
    %721 = vmatpush1.msra.mxu0 %v696
    %722 = vmatprep.subr.mxu0 0.0
    %723 = vmatpush1.msra.mxu0 %v697
    %724 = vmatprep.subr.mxu0 0.0
    %725 = vmatpush1.msra.mxu0 %v698
    %726 = vmatprep.subr.mxu0 0.0
    %727 = vmatpush1.msra.mxu0 %v699
    %728 = vmatprep.subr.mxu0 0.0
    %729 = vmatpush1.msra.mxu0 %v700
    %730 = vmatprep.subr.mxu0 0.0
    %731 = vmatpush1.msra.mxu0 %v701
    %732 = vmatprep.subr.mxu0 0.0
    %733 = vmatpush1.msra.mxu0 %v702
    %734 = vmatprep.subr.mxu0 0.0
    %735 = vmatpush1.msra.mxu0 %v703
    %736 = vmatprep.subr.mxu0 0.0
    %737 = vmatpush1.msra.mxu0 0.0
    %738 = vmatprep.subr.mxu0 0.0
    %739 = vmatpush1.msra.mxu0 0.0
    %740 = vmatprep.subr.mxu0 0.0
    %741 = vmatpush1.msra.mxu0 0.0
    %742 = vmatprep.subr.mxu0 0.0
    %743 = vmatpush1.msra.mxu0 0.0
    %744 = vmatprep.subr.mxu0 0.0
    %745 = vmatpush1.msra.mxu0 0.0
    %746 = vmatprep.subr.mxu0 0.0
    %747 = vmatpush1.msra.mxu0 0.0
    %748 = vmatprep.subr.mxu0 0.0
    %749 = vmatpush1.msra.mxu0 0.0
    %750 = vmatprep.subr.mxu0 0.0
    %751 = vmatpush1.msra.mxu0 0.0
    %752 = vmatprep.subr.mxu0 0.0
    %753 = vmatpush1.msra.mxu0 0.0
    %754 = vmatprep.subr.mxu0 0.0
    %755 = vmatpush1.msra.mxu0 0.0
    %756 = vmatprep.subr.mxu0 0.0
    %757 = vmatpush1.msra.mxu0 0.0
    %758 = vmatprep.subr.mxu0 0.0
    %759 = vmatpush1.msra.mxu0 0.0
    %760 = vmatprep.subr.mxu0 0.0
    %761 = vmatpush1.msra.mxu0 0.0
    %762 = vmatprep.subr.mxu0 0.0
    %763 = vmatpush1.msra.mxu0 0.0
    %764 = vmatprep.subr.mxu0 0.0
    %765 = vmatpush1.msra.mxu0 0.0
    %766 = vmatprep.subr.mxu0 0.0
    %767 = vmatpush1.msra.mxu0 0.0
    %768 = vmatprep.mubr.f32.mxu0 0.0
    %769 = vmatmul.mubr.f32.gmra.mrb[0].mxu0 %v686
    %v770 = vpop.f32.mrb[0].mxu0
    %v771 = vadd.f32 0.0, %v770
    %v772 = vpop.f32.mrb[0].mxu0
    %773 = vdwg.mxu0
    %v774 = vadd.f32 %v681, %v771
    %v775 = vrot.slane %v232, 4
    %v777 = vrot.slane %v405, 3
    %v779 = vsel %vm410, %v775, %v777
    %s780 = scalar_lea.vmem %s3, 512
    %v781 = vld [vmem:[%s780] sm:$0xff]
    %v782 = vld [vmem:[%s780 + $0x8] sm:$0xff]
    %v783 = vld [vmem:[%s780 + $0x10] sm:$0xff]
    %v784 = vld [vmem:[%s780 + $0x18] sm:$0xff]
    %v785 = vld [vmem:[%s780 + $0x20] sm:$0xff]
    %v786 = vld [vmem:[%s780 + $0x28] sm:$0xff]
    %v787 = vld [vmem:[%s780 + $0x30] sm:$0xff]
    %v788 = vld [vmem:[%s780 + $0x38] sm:$0xff]
    %v789 = vld [vmem:[%s780 + $0x40] sm:$0xff]
    %v790 = vld [vmem:[%s780 + $0x48] sm:$0xff]
    %v791 = vld [vmem:[%s780 + $0x50] sm:$0xff]
    %v792 = vld [vmem:[%s780 + $0x58] sm:$0xff]
    %v793 = vld [vmem:[%s780 + $0x60] sm:$0xff]
    %v794 = vld [vmem:[%s780 + $0x68] sm:$0xff]
    %v795 = vld [vmem:[%s780 + $0x70] sm:$0xff]
    %v796 = vld [vmem:[%s780 + $0x78] sm:$0xff]
    %797 = vmatprep.subr.mxu0 0.0
    %798 = vmatpush1.msra.mxu0 %v781
    %799 = vmatprep.subr.mxu0 0.0
    %800 = vmatpush1.msra.mxu0 %v782
    %801 = vmatprep.subr.mxu0 0.0
    %802 = vmatpush1.msra.mxu0 %v783
    %803 = vmatprep.subr.mxu0 0.0
    %804 = vmatpush1.msra.mxu0 %v784
    %805 = vmatprep.subr.mxu0 0.0
    %806 = vmatpush1.msra.mxu0 %v785
    %807 = vmatprep.subr.mxu0 0.0
    %808 = vmatpush1.msra.mxu0 %v786
    %809 = vmatprep.subr.mxu0 0.0
    %810 = vmatpush1.msra.mxu0 %v787
    %811 = vmatprep.subr.mxu0 0.0
    %812 = vmatpush1.msra.mxu0 %v788
    %813 = vmatprep.subr.mxu0 0.0
    %814 = vmatpush1.msra.mxu0 %v789
    %815 = vmatprep.subr.mxu0 0.0
    %816 = vmatpush1.msra.mxu0 %v790
    %817 = vmatprep.subr.mxu0 0.0
    %818 = vmatpush1.msra.mxu0 %v791
    %819 = vmatprep.subr.mxu0 0.0
    %820 = vmatpush1.msra.mxu0 %v792
    %821 = vmatprep.subr.mxu0 0.0
    %822 = vmatpush1.msra.mxu0 %v793
    %823 = vmatprep.subr.mxu0 0.0
    %824 = vmatpush1.msra.mxu0 %v794
    %825 = vmatprep.subr.mxu0 0.0
    %826 = vmatpush1.msra.mxu0 %v795
    %827 = vmatprep.subr.mxu0 0.0
    %828 = vmatpush1.msra.mxu0 %v796
    %829 = vmatprep.subr.mxu0 0.0
    %830 = vmatpush1.msra.mxu0 0.0
    %831 = vmatprep.subr.mxu0 0.0
    %832 = vmatpush1.msra.mxu0 0.0
    %833 = vmatprep.subr.mxu0 0.0
    %834 = vmatpush1.msra.mxu0 0.0
    %835 = vmatprep.subr.mxu0 0.0
    %836 = vmatpush1.msra.mxu0 0.0
    %837 = vmatprep.subr.mxu0 0.0
    %838 = vmatpush1.msra.mxu0 0.0
    %839 = vmatprep.subr.mxu0 0.0
    %840 = vmatpush1.msra.mxu0 0.0
    %841 = vmatprep.subr.mxu0 0.0
    %842 = vmatpush1.msra.mxu0 0.0
    %843 = vmatprep.subr.mxu0 0.0
    %844 = vmatpush1.msra.mxu0 0.0
    %845 = vmatprep.subr.mxu0 0.0
    %846 = vmatpush1.msra.mxu0 0.0
    %847 = vmatprep.subr.mxu0 0.0
    %848 = vmatpush1.msra.mxu0 0.0
    %849 = vmatprep.subr.mxu0 0.0
    %850 = vmatpush1.msra.mxu0 0.0
    %851 = vmatprep.subr.mxu0 0.0
    %852 = vmatpush1.msra.mxu0 0.0
    %853 = vmatprep.subr.mxu0 0.0
    %854 = vmatpush1.msra.mxu0 0.0
    %855 = vmatprep.subr.mxu0 0.0
    %856 = vmatpush1.msra.mxu0 0.0
    %857 = vmatprep.subr.mxu0 0.0
    %858 = vmatpush1.msra.mxu0 0.0
    %859 = vmatprep.subr.mxu0 0.0
    %860 = vmatpush1.msra.mxu0 0.0
    %861 = vmatprep.mubr.f32.mxu0 0.0
    %862 = vmatmul.mubr.f32.gmra.mrb[0].mxu0 %v779
    %v863 = vpop.f32.mrb[0].mxu0
    %v864 = vadd.f32 0.0, %v863
    %v865 = vpop.f32.mrb[0].mxu0
    %866 = vdwg.mxu0
    %v867 = vadd.f32 %v774, %v864
    %v868 = vrot.slane %v232, 5
    %v870 = vrot.slane %v405, 4
    %v872 = vsel %vm410, %v868, %v870
    %s873 = scalar_lea.vmem %s3, 640
    %v874 = vld [vmem:[%s873] sm:$0xff]
    %v875 = vld [vmem:[%s873 + $0x8] sm:$0xff]
    %v876 = vld [vmem:[%s873 + $0x10] sm:$0xff]
    %v877 = vld [vmem:[%s873 + $0x18] sm:$0xff]
    %v878 = vld [vmem:[%s873 + $0x20] sm:$0xff]
    %v879 = vld [vmem:[%s873 + $0x28] sm:$0xff]
    %v880 = vld [vmem:[%s873 + $0x30] sm:$0xff]
    %v881 = vld [vmem:[%s873 + $0x38] sm:$0xff]
    %v882 = vld [vmem:[%s873 + $0x40] sm:$0xff]
    %v883 = vld [vmem:[%s873 + $0x48] sm:$0xff]
    %v884 = vld [vmem:[%s873 + $0x50] sm:$0xff]
    %v885 = vld [vmem:[%s873 + $0x58] sm:$0xff]
    %v886 = vld [vmem:[%s873 + $0x60] sm:$0xff]
    %v887 = vld [vmem:[%s873 + $0x68] sm:$0xff]
    %v888 = vld [vmem:[%s873 + $0x70] sm:$0xff]
    %v889 = vld [vmem:[%s873 + $0x78] sm:$0xff]
    %890 = vmatprep.subr.mxu0 0.0
    %891 = vmatpush1.msra.mxu0 %v874
    %892 = vmatprep.subr.mxu0 0.0
    %893 = vmatpush1.msra.mxu0 %v875
    %894 = vmatprep.subr.mxu0 0.0
    %895 = vmatpush1.msra.mxu0 %v876
    %896 = vmatprep.subr.mxu0 0.0
    %897 = vmatpush1.msra.mxu0 %v877
    %898 = vmatprep.subr.mxu0 0.0
    %899 = vmatpush1.msra.mxu0 %v878
    %900 = vmatprep.subr.mxu0 0.0
    %901 = vmatpush1.msra.mxu0 %v879
    %902 = vmatprep.subr.mxu0 0.0
    %903 = vmatpush1.msra.mxu0 %v880
    %904 = vmatprep.subr.mxu0 0.0
    %905 = vmatpush1.msra.mxu0 %v881
    %906 = vmatprep.subr.mxu0 0.0
    %907 = vmatpush1.msra.mxu0 %v882
    %908 = vmatprep.subr.mxu0 0.0
    %909 = vmatpush1.msra.mxu0 %v883
    %910 = vmatprep.subr.mxu0 0.0
    %911 = vmatpush1.msra.mxu0 %v884
    %912 = vmatprep.subr.mxu0 0.0
    %913 = vmatpush1.msra.mxu0 %v885
    %914 = vmatprep.subr.mxu0 0.0
    %915 = vmatpush1.msra.mxu0 %v886
    %916 = vmatprep.subr.mxu0 0.0
    %917 = vmatpush1.msra.mxu0 %v887
    %918 = vmatprep.subr.mxu0 0.0
    %919 = vmatpush1.msra.mxu0 %v888
    %920 = vmatprep.subr.mxu0 0.0
    %921 = vmatpush1.msra.mxu0 %v889
    %922 = vmatprep.subr.mxu0 0.0
    %923 = vmatpush1.msra.mxu0 0.0
    %924 = vmatprep.subr.mxu0 0.0
    %925 = vmatpush1.msra.mxu0 0.0
    %926 = vmatprep.subr.mxu0 0.0
    %927 = vmatpush1.msra.mxu0 0.0
    %928 = vmatprep.subr.mxu0 0.0
    %929 = vmatpush1.msra.mxu0 0.0
    %930 = vmatprep.subr.mxu0 0.0
    %931 = vmatpush1.msra.mxu0 0.0
    %932 = vmatprep.subr.mxu0 0.0
    %933 = vmatpush1.msra.mxu0 0.0
    %934 = vmatprep.subr.mxu0 0.0
    %935 = vmatpush1.msra.mxu0 0.0
    %936 = vmatprep.subr.mxu0 0.0
    %937 = vmatpush1.msra.mxu0 0.0
    %938 = vmatprep.subr.mxu0 0.0
    %939 = vmatpush1.msra.mxu0 0.0
    %940 = vmatprep.subr.mxu0 0.0
    %941 = vmatpush1.msra.mxu0 0.0
    %942 = vmatprep.subr.mxu0 0.0
    %943 = vmatpush1.msra.mxu0 0.0
    %944 = vmatprep.subr.mxu0 0.0
    %945 = vmatpush1.msra.mxu0 0.0
    %946 = vmatprep.subr.mxu0 0.0
    %947 = vmatpush1.msra.mxu0 0.0
    %948 = vmatprep.subr.mxu0 0.0
    %949 = vmatpush1.msra.mxu0 0.0
    %950 = vmatprep.subr.mxu0 0.0
    %951 = vmatpush1.msra.mxu0 0.0
    %952 = vmatprep.subr.mxu0 0.0
    %953 = vmatpush1.msra.mxu0 0.0
    %954 = vmatprep.mubr.f32.mxu0 0.0
    %955 = vmatmul.mubr.f32.gmra.mrb[0].mxu0 %v872
    %v956 = vpop.f32.mrb[0].mxu0
    %v957 = vadd.f32 0.0, %v956
    %v958 = vpop.f32.mrb[0].mxu0
    %959 = vdwg.mxu0
    %v960 = vadd.f32 %v867, %v957
    %v961 = vrot.slane %v232, 6
    %v963 = vrot.slane %v405, 5
    %v965 = vsel %vm410, %v961, %v963
    %s966 = scalar_lea.vmem %s3, 768
    %v967 = vld [vmem:[%s966] sm:$0xff]
    %v968 = vld [vmem:[%s966 + $0x8] sm:$0xff]
    %v969 = vld [vmem:[%s966 + $0x10] sm:$0xff]
    %v970 = vld [vmem:[%s966 + $0x18] sm:$0xff]
    %v971 = vld [vmem:[%s966 + $0x20] sm:$0xff]
    %v972 = vld [vmem:[%s966 + $0x28] sm:$0xff]
    %v973 = vld [vmem:[%s966 + $0x30] sm:$0xff]
    %v974 = vld [vmem:[%s966 + $0x38] sm:$0xff]
    %v975 = vld [vmem:[%s966 + $0x40] sm:$0xff]
    %v976 = vld [vmem:[%s966 + $0x48] sm:$0xff]
    %v977 = vld [vmem:[%s966 + $0x50] sm:$0xff]
    %v978 = vld [vmem:[%s966 + $0x58] sm:$0xff]
    %v979 = vld [vmem:[%s966 + $0x60] sm:$0xff]
    %v980 = vld [vmem:[%s966 + $0x68] sm:$0xff]
    %v981 = vld [vmem:[%s966 + $0x70] sm:$0xff]
    %v982 = vld [vmem:[%s966 + $0x78] sm:$0xff]
    %983 = vmatprep.subr.mxu0 0.0
    %984 = vmatpush1.msra.mxu0 %v967
    %985 = vmatprep.subr.mxu0 0.0
    %986 = vmatpush1.msra.mxu0 %v968
    %987 = vmatprep.subr.mxu0 0.0
    %988 = vmatpush1.msra.mxu0 %v969
    %989 = vmatprep.subr.mxu0 0.0
    %990 = vmatpush1.msra.mxu0 %v970
    %991 = vmatprep.subr.mxu0 0.0
    %992 = vmatpush1.msra.mxu0 %v971
    %993 = vmatprep.subr.mxu0 0.0
    %994 = vmatpush1.msra.mxu0 %v972
    %995 = vmatprep.subr.mxu0 0.0
    %996 = vmatpush1.msra.mxu0 %v973
    %997 = vmatprep.subr.mxu0 0.0
    %998 = vmatpush1.msra.mxu0 %v974
    %999 = vmatprep.subr.mxu0 0.0
    %1000 = vmatpush1.msra.mxu0 %v975
    %1001 = vmatprep.subr.mxu0 0.0
    %1002 = vmatpush1.msra.mxu0 %v976
    %1003 = vmatprep.subr.mxu0 0.0
    %1004 = vmatpush1.msra.mxu0 %v977
    %1005 = vmatprep.subr.mxu0 0.0
    %1006 = vmatpush1.msra.mxu0 %v978
    %1007 = vmatprep.subr.mxu0 0.0
    %1008 = vmatpush1.msra.mxu0 %v979
    %1009 = vmatprep.subr.mxu0 0.0
    %1010 = vmatpush1.msra.mxu0 %v980
    %1011 = vmatprep.subr.mxu0 0.0
    %1012 = vmatpush1.msra.mxu0 %v981
    %1013 = vmatprep.subr.mxu0 0.0
    %1014 = vmatpush1.msra.mxu0 %v982
    %1015 = vmatprep.subr.mxu0 0.0
    %1016 = vmatpush1.msra.mxu0 0.0
    %1017 = vmatprep.subr.mxu0 0.0
    %1018 = vmatpush1.msra.mxu0 0.0
    %1019 = vmatprep.subr.mxu0 0.0
    %1020 = vmatpush1.msra.mxu0 0.0
    %1021 = vmatprep.subr.mxu0 0.0
    %1022 = vmatpush1.msra.mxu0 0.0
    %1023 = vmatprep.subr.mxu0 0.0
    %1024 = vmatpush1.msra.mxu0 0.0
    %1025 = vmatprep.subr.mxu0 0.0
    %1026 = vmatpush1.msra.mxu0 0.0
    %1027 = vmatprep.subr.mxu0 0.0
    %1028 = vmatpush1.msra.mxu0 0.0
    %1029 = vmatprep.subr.mxu0 0.0
    %1030 = vmatpush1.msra.mxu0 0.0
    %1031 = vmatprep.subr.mxu0 0.0
    %1032 = vmatpush1.msra.mxu0 0.0
    %1033 = vmatprep.subr.mxu0 0.0
    %1034 = vmatpush1.msra.mxu0 0.0
    %1035 = vmatprep.subr.mxu0 0.0
    %1036 = vmatpush1.msra.mxu0 0.0
    %1037 = vmatprep.subr.mxu0 0.0
    %1038 = vmatpush1.msra.mxu0 0.0
    %1039 = vmatprep.subr.mxu0 0.0
    %1040 = vmatpush1.msra.mxu0 0.0
    %1041 = vmatprep.subr.mxu0 0.0
    %1042 = vmatpush1.msra.mxu0 0.0
    %1043 = vmatprep.subr.mxu0 0.0
    %1044 = vmatpush1.msra.mxu0 0.0
    %1045 = vmatprep.subr.mxu0 0.0
    %1046 = vmatpush1.msra.mxu0 0.0
    %1047 = vmatprep.mubr.f32.mxu0 0.0
    %1048 = vmatmul.mubr.f32.gmra.mrb[0].mxu0 %v965
    %v1049 = vpop.f32.mrb[0].mxu0
    %v1050 = vadd.f32 0.0, %v1049
    %v1051 = vpop.f32.mrb[0].mxu0
    %1052 = vdwg.mxu0
    %v1053 = vadd.f32 %v960, %v1050
    %v1054 = vrot.slane %v232, 7
    %v1056 = vrot.slane %v405, 6
    %v1058 = vsel %vm410, %v1054, %v1056
    %s1059 = scalar_lea.vmem %s3, 896
    %v1060 = vld [vmem:[%s1059] sm:$0xff]
    %v1061 = vld [vmem:[%s1059 + $0x8] sm:$0xff]
    %v1062 = vld [vmem:[%s1059 + $0x10] sm:$0xff]
    %v1063 = vld [vmem:[%s1059 + $0x18] sm:$0xff]
    %v1064 = vld [vmem:[%s1059 + $0x20] sm:$0xff]
    %v1065 = vld [vmem:[%s1059 + $0x28] sm:$0xff]
    %v1066 = vld [vmem:[%s1059 + $0x30] sm:$0xff]
    %v1067 = vld [vmem:[%s1059 + $0x38] sm:$0xff]
    %v1068 = vld [vmem:[%s1059 + $0x40] sm:$0xff]
    %v1069 = vld [vmem:[%s1059 + $0x48] sm:$0xff]
    %v1070 = vld [vmem:[%s1059 + $0x50] sm:$0xff]
    %v1071 = vld [vmem:[%s1059 + $0x58] sm:$0xff]
    %v1072 = vld [vmem:[%s1059 + $0x60] sm:$0xff]
    %v1073 = vld [vmem:[%s1059 + $0x68] sm:$0xff]
    %v1074 = vld [vmem:[%s1059 + $0x70] sm:$0xff]
    %v1075 = vld [vmem:[%s1059 + $0x78] sm:$0xff]
    %1076 = vmatprep.subr.mxu0 0.0
    %1077 = vmatpush1.msra.mxu0 %v1060
    %1078 = vmatprep.subr.mxu0 0.0
    %1079 = vmatpush1.msra.mxu0 %v1061
    %1080 = vmatprep.subr.mxu0 0.0
    %1081 = vmatpush1.msra.mxu0 %v1062
    %1082 = vmatprep.subr.mxu0 0.0
    %1083 = vmatpush1.msra.mxu0 %v1063
    %1084 = vmatprep.subr.mxu0 0.0
    %1085 = vmatpush1.msra.mxu0 %v1064
    %1086 = vmatprep.subr.mxu0 0.0
    %1087 = vmatpush1.msra.mxu0 %v1065
    %1088 = vmatprep.subr.mxu0 0.0
    %1089 = vmatpush1.msra.mxu0 %v1066
    %1090 = vmatprep.subr.mxu0 0.0
    %1091 = vmatpush1.msra.mxu0 %v1067
    %1092 = vmatprep.subr.mxu0 0.0
    %1093 = vmatpush1.msra.mxu0 %v1068
    %1094 = vmatprep.subr.mxu0 0.0
    %1095 = vmatpush1.msra.mxu0 %v1069
    %1096 = vmatprep.subr.mxu0 0.0
    %1097 = vmatpush1.msra.mxu0 %v1070
    %1098 = vmatprep.subr.mxu0 0.0
    %1099 = vmatpush1.msra.mxu0 %v1071
    %1100 = vmatprep.subr.mxu0 0.0
    %1101 = vmatpush1.msra.mxu0 %v1072
    %1102 = vmatprep.subr.mxu0 0.0
    %1103 = vmatpush1.msra.mxu0 %v1073
    %1104 = vmatprep.subr.mxu0 0.0
    %1105 = vmatpush1.msra.mxu0 %v1074
    %1106 = vmatprep.subr.mxu0 0.0
    %1107 = vmatpush1.msra.mxu0 %v1075
    %1108 = vmatprep.subr.mxu0 0.0
    %1109 = vmatpush1.msra.mxu0 0.0
    %1110 = vmatprep.subr.mxu0 0.0
    %1111 = vmatpush1.msra.mxu0 0.0
    %1112 = vmatprep.subr.mxu0 0.0
    %1113 = vmatpush1.msra.mxu0 0.0
    %1114 = vmatprep.subr.mxu0 0.0
    %1115 = vmatpush1.msra.mxu0 0.0
    %1116 = vmatprep.subr.mxu0 0.0
    %1117 = vmatpush1.msra.mxu0 0.0
    %1118 = vmatprep.subr.mxu0 0.0
    %1119 = vmatpush1.msra.mxu0 0.0
    %1120 = vmatprep.subr.mxu0 0.0
    %1121 = vmatpush1.msra.mxu0 0.0
    %1122 = vmatprep.subr.mxu0 0.0
    %1123 = vmatpush1.msra.mxu0 0.0
    %1124 = vmatprep.subr.mxu0 0.0
    %1125 = vmatpush1.msra.mxu0 0.0
    %1126 = vmatprep.subr.mxu0 0.0
    %1127 = vmatpush1.msra.mxu0 0.0
    %1128 = vmatprep.subr.mxu0 0.0
    %1129 = vmatpush1.msra.mxu0 0.0
    %1130 = vmatprep.subr.mxu0 0.0
    %1131 = vmatpush1.msra.mxu0 0.0
    %1132 = vmatprep.subr.mxu0 0.0
    %1133 = vmatpush1.msra.mxu0 0.0
    %1134 = vmatprep.subr.mxu0 0.0
    %1135 = vmatpush1.msra.mxu0 0.0
    %1136 = vmatprep.subr.mxu0 0.0
    %1137 = vmatpush1.msra.mxu0 0.0
    %1138 = vmatprep.subr.mxu0 0.0
    %1139 = vmatpush1.msra.mxu0 0.0
    %1140 = vmatprep.mubr.f32.mxu0 0.0
    %1141 = vmatmul.mubr.f32.gmra.mrb[0].mxu0 %v1058
    %v1142 = vpop.f32.mrb[0].mxu0
    %v1143 = vadd.f32 0.0, %v1142
    %v1144 = vpop.f32.mrb[0].mxu0
    %1145 = vdwg.mxu0
    %v1146 = vadd.f32 %v1053, %v1143
    %v1148 = vrot.slane %v406, 7
    %v1150 = vsel %vm410, %v233, %v1148
    %s1151 = scalar_lea.vmem %s3, 1024
    %v1152 = vld [vmem:[%s1151] sm:$0xff]
    %v1153 = vld [vmem:[%s1151 + $0x8] sm:$0xff]
    %v1154 = vld [vmem:[%s1151 + $0x10] sm:$0xff]
    %v1155 = vld [vmem:[%s1151 + $0x18] sm:$0xff]
    %v1156 = vld [vmem:[%s1151 + $0x20] sm:$0xff]
    %v1157 = vld [vmem:[%s1151 + $0x28] sm:$0xff]
    %v1158 = vld [vmem:[%s1151 + $0x30] sm:$0xff]
    %v1159 = vld [vmem:[%s1151 + $0x38] sm:$0xff]
    %v1160 = vld [vmem:[%s1151 + $0x40] sm:$0xff]
    %v1161 = vld [vmem:[%s1151 + $0x48] sm:$0xff]
    %v1162 = vld [vmem:[%s1151 + $0x50] sm:$0xff]
    %v1163 = vld [vmem:[%s1151 + $0x58] sm:$0xff]
    %v1164 = vld [vmem:[%s1151 + $0x60] sm:$0xff]
    %v1165 = vld [vmem:[%s1151 + $0x68] sm:$0xff]
    %v1166 = vld [vmem:[%s1151 + $0x70] sm:$0xff]
    %v1167 = vld [vmem:[%s1151 + $0x78] sm:$0xff]
    %1168 = vmatprep.subr.mxu0 0.0
    %1169 = vmatpush1.msra.mxu0 %v1152
    %1170 = vmatprep.subr.mxu0 0.0
    %1171 = vmatpush1.msra.mxu0 %v1153
    %1172 = vmatprep.subr.mxu0 0.0
    %1173 = vmatpush1.msra.mxu0 %v1154
    %1174 = vmatprep.subr.mxu0 0.0
    %1175 = vmatpush1.msra.mxu0 %v1155
    %1176 = vmatprep.subr.mxu0 0.0
    %1177 = vmatpush1.msra.mxu0 %v1156
    %1178 = vmatprep.subr.mxu0 0.0
    %1179 = vmatpush1.msra.mxu0 %v1157
    %1180 = vmatprep.subr.mxu0 0.0
    %1181 = vmatpush1.msra.mxu0 %v1158
    %1182 = vmatprep.subr.mxu0 0.0
    %1183 = vmatpush1.msra.mxu0 %v1159
    %1184 = vmatprep.subr.mxu0 0.0
    %1185 = vmatpush1.msra.mxu0 %v1160
    %1186 = vmatprep.subr.mxu0 0.0
    %1187 = vmatpush1.msra.mxu0 %v1161
    %1188 = vmatprep.subr.mxu0 0.0
    %1189 = vmatpush1.msra.mxu0 %v1162
    %1190 = vmatprep.subr.mxu0 0.0
    %1191 = vmatpush1.msra.mxu0 %v1163
    %1192 = vmatprep.subr.mxu0 0.0
    %1193 = vmatpush1.msra.mxu0 %v1164
    %1194 = vmatprep.subr.mxu0 0.0
    %1195 = vmatpush1.msra.mxu0 %v1165
    %1196 = vmatprep.subr.mxu0 0.0
    %1197 = vmatpush1.msra.mxu0 %v1166
    %1198 = vmatprep.subr.mxu0 0.0
    %1199 = vmatpush1.msra.mxu0 %v1167
    %1200 = vmatprep.subr.mxu0 0.0
    %1201 = vmatpush1.msra.mxu0 0.0
    %1202 = vmatprep.subr.mxu0 0.0
    %1203 = vmatpush1.msra.mxu0 0.0
    %1204 = vmatprep.subr.mxu0 0.0
    %1205 = vmatpush1.msra.mxu0 0.0
    %1206 = vmatprep.subr.mxu0 0.0
    %1207 = vmatpush1.msra.mxu0 0.0
    %1208 = vmatprep.subr.mxu0 0.0
    %1209 = vmatpush1.msra.mxu0 0.0
    %1210 = vmatprep.subr.mxu0 0.0
    %1211 = vmatpush1.msra.mxu0 0.0
    %1212 = vmatprep.subr.mxu0 0.0
    %1213 = vmatpush1.msra.mxu0 0.0
    %1214 = vmatprep.subr.mxu0 0.0
    %1215 = vmatpush1.msra.mxu0 0.0
    %1216 = vmatprep.subr.mxu0 0.0
    %1217 = vmatpush1.msra.mxu0 0.0
    %1218 = vmatprep.subr.mxu0 0.0
    %1219 = vmatpush1.msra.mxu0 0.0
    %1220 = vmatprep.subr.mxu0 0.0
    %1221 = vmatpush1.msra.mxu0 0.0
    %1222 = vmatprep.subr.mxu0 0.0
    %1223 = vmatpush1.msra.mxu0 0.0
    %1224 = vmatprep.subr.mxu0 0.0
    %1225 = vmatpush1.msra.mxu0 0.0
    %1226 = vmatprep.subr.mxu0 0.0
    %1227 = vmatpush1.msra.mxu0 0.0
    %1228 = vmatprep.subr.mxu0 0.0
    %1229 = vmatpush1.msra.mxu0 0.0
    %1230 = vmatprep.subr.mxu0 0.0
    %1231 = vmatpush1.msra.mxu0 0.0
    %1232 = vmatprep.mubr.f32.mxu0 0.0
    %1233 = vmatmul.mubr.f32.gmra.mrb[0].mxu0 %v1150
    %v1234 = vpop.f32.mrb[0].mxu0
    %v1235 = vadd.f32 0.0, %v1234
    %v1236 = vpop.f32.mrb[0].mxu0
    %1237 = vdwg.mxu0
    %v1238 = vadd.f32 %v1146, %v1235
    %v1240 = vrot.slane %v233, 1
    %v1242 = vsel %vm410, %v1240, %v406
    %s1243 = scalar_lea.vmem %s3, 1152
    %v1244 = vld [vmem:[%s1243] sm:$0xff]
    %v1245 = vld [vmem:[%s1243 + $0x8] sm:$0xff]
    %v1246 = vld [vmem:[%s1243 + $0x10] sm:$0xff]
    %v1247 = vld [vmem:[%s1243 + $0x18] sm:$0xff]
    %v1248 = vld [vmem:[%s1243 + $0x20] sm:$0xff]
    %v1249 = vld [vmem:[%s1243 + $0x28] sm:$0xff]
    %v1250 = vld [vmem:[%s1243 + $0x30] sm:$0xff]
    %v1251 = vld [vmem:[%s1243 + $0x38] sm:$0xff]
    %v1252 = vld [vmem:[%s1243 + $0x40] sm:$0xff]
    %v1253 = vld [vmem:[%s1243 + $0x48] sm:$0xff]
    %v1254 = vld [vmem:[%s1243 + $0x50] sm:$0xff]
    %v1255 = vld [vmem:[%s1243 + $0x58] sm:$0xff]
    %v1256 = vld [vmem:[%s1243 + $0x60] sm:$0xff]
    %v1257 = vld [vmem:[%s1243 + $0x68] sm:$0xff]
    %v1258 = vld [vmem:[%s1243 + $0x70] sm:$0xff]
    %v1259 = vld [vmem:[%s1243 + $0x78] sm:$0xff]
    %1260 = vmatprep.subr.mxu0 0.0
    %1261 = vmatpush1.msra.mxu0 %v1244
    %1262 = vmatprep.subr.mxu0 0.0
    %1263 = vmatpush1.msra.mxu0 %v1245
    %1264 = vmatprep.subr.mxu0 0.0
    %1265 = vmatpush1.msra.mxu0 %v1246
    %1266 = vmatprep.subr.mxu0 0.0
    %1267 = vmatpush1.msra.mxu0 %v1247
    %1268 = vmatprep.subr.mxu0 0.0
    %1269 = vmatpush1.msra.mxu0 %v1248
    %1270 = vmatprep.subr.mxu0 0.0
    %1271 = vmatpush1.msra.mxu0 %v1249
    %1272 = vmatprep.subr.mxu0 0.0
    %1273 = vmatpush1.msra.mxu0 %v1250
    %1274 = vmatprep.subr.mxu0 0.0
    %1275 = vmatpush1.msra.mxu0 %v1251
    %1276 = vmatprep.subr.mxu0 0.0
    %1277 = vmatpush1.msra.mxu0 %v1252
    %1278 = vmatprep.subr.mxu0 0.0
    %1279 = vmatpush1.msra.mxu0 %v1253
    %1280 = vmatprep.subr.mxu0 0.0
    %1281 = vmatpush1.msra.mxu0 %v1254
    %1282 = vmatprep.subr.mxu0 0.0
    %1283 = vmatpush1.msra.mxu0 %v1255
    %1284 = vmatprep.subr.mxu0 0.0
    %1285 = vmatpush1.msra.mxu0 %v1256
    %1286 = vmatprep.subr.mxu0 0.0
    %1287 = vmatpush1.msra.mxu0 %v1257
    %1288 = vmatprep.subr.mxu0 0.0
    %1289 = vmatpush1.msra.mxu0 %v1258
    %1290 = vmatprep.subr.mxu0 0.0
    %1291 = vmatpush1.msra.mxu0 %v1259
    %1292 = vmatprep.subr.mxu0 0.0
    %1293 = vmatpush1.msra.mxu0 0.0
    %1294 = vmatprep.subr.mxu0 0.0
    %1295 = vmatpush1.msra.mxu0 0.0
    %1296 = vmatprep.subr.mxu0 0.0
    %1297 = vmatpush1.msra.mxu0 0.0
    %1298 = vmatprep.subr.mxu0 0.0
    %1299 = vmatpush1.msra.mxu0 0.0
    %1300 = vmatprep.subr.mxu0 0.0
    %1301 = vmatpush1.msra.mxu0 0.0
    %1302 = vmatprep.subr.mxu0 0.0
    %1303 = vmatpush1.msra.mxu0 0.0
    %1304 = vmatprep.subr.mxu0 0.0
    %1305 = vmatpush1.msra.mxu0 0.0
    %1306 = vmatprep.subr.mxu0 0.0
    %1307 = vmatpush1.msra.mxu0 0.0
    %1308 = vmatprep.subr.mxu0 0.0
    %1309 = vmatpush1.msra.mxu0 0.0
    %1310 = vmatprep.subr.mxu0 0.0
    %1311 = vmatpush1.msra.mxu0 0.0
    %1312 = vmatprep.subr.mxu0 0.0
    %1313 = vmatpush1.msra.mxu0 0.0
    %1314 = vmatprep.subr.mxu0 0.0
    %1315 = vmatpush1.msra.mxu0 0.0
    %1316 = vmatprep.subr.mxu0 0.0
    %1317 = vmatpush1.msra.mxu0 0.0
    %1318 = vmatprep.subr.mxu0 0.0
    %1319 = vmatpush1.msra.mxu0 0.0
    %1320 = vmatprep.subr.mxu0 0.0
    %1321 = vmatpush1.msra.mxu0 0.0
    %1322 = vmatprep.subr.mxu0 0.0
    %1323 = vmatpush1.msra.mxu0 0.0
    %1324 = vmatprep.mubr.f32.mxu0 0.0
    %1325 = vmatmul.mubr.f32.gmra.mrb[0].mxu0 %v1242
    %v1326 = vpop.f32.mrb[0].mxu0
    %v1327 = vadd.f32 0.0, %v1326
    %v1328 = vpop.f32.mrb[0].mxu0
    %1329 = vdwg.mxu0
    %v1330 = vadd.f32 %v1238, %v1327
    %v1331 = vrot.slane %v233, 2
    %v1333 = vrot.slane %v406, 1
    %v1335 = vsel %vm410, %v1331, %v1333
    %s1336 = scalar_lea.vmem %s3, 1280
    %v1337 = vld [vmem:[%s1336] sm:$0xff]
    %v1338 = vld [vmem:[%s1336 + $0x8] sm:$0xff]
    %v1339 = vld [vmem:[%s1336 + $0x10] sm:$0xff]
    %v1340 = vld [vmem:[%s1336 + $0x18] sm:$0xff]
    %v1341 = vld [vmem:[%s1336 + $0x20] sm:$0xff]
    %v1342 = vld [vmem:[%s1336 + $0x28] sm:$0xff]
    %v1343 = vld [vmem:[%s1336 + $0x30] sm:$0xff]
    %v1344 = vld [vmem:[%s1336 + $0x38] sm:$0xff]
    %v1345 = vld [vmem:[%s1336 + $0x40] sm:$0xff]
    %v1346 = vld [vmem:[%s1336 + $0x48] sm:$0xff]
    %v1347 = vld [vmem:[%s1336 + $0x50] sm:$0xff]
    %v1348 = vld [vmem:[%s1336 + $0x58] sm:$0xff]
    %v1349 = vld [vmem:[%s1336 + $0x60] sm:$0xff]
    %v1350 = vld [vmem:[%s1336 + $0x68] sm:$0xff]
    %v1351 = vld [vmem:[%s1336 + $0x70] sm:$0xff]
    %v1352 = vld [vmem:[%s1336 + $0x78] sm:$0xff]
    %1353 = vmatprep.subr.mxu0 0.0
    %1354 = vmatpush1.msra.mxu0 %v1337
    %1355 = vmatprep.subr.mxu0 0.0
    %1356 = vmatpush1.msra.mxu0 %v1338
    %1357 = vmatprep.subr.mxu0 0.0
    %1358 = vmatpush1.msra.mxu0 %v1339
    %1359 = vmatprep.subr.mxu0 0.0
    %1360 = vmatpush1.msra.mxu0 %v1340
    %1361 = vmatprep.subr.mxu0 0.0
    %1362 = vmatpush1.msra.mxu0 %v1341
    %1363 = vmatprep.subr.mxu0 0.0
    %1364 = vmatpush1.msra.mxu0 %v1342
    %1365 = vmatprep.subr.mxu0 0.0
    %1366 = vmatpush1.msra.mxu0 %v1343
    %1367 = vmatprep.subr.mxu0 0.0
    %1368 = vmatpush1.msra.mxu0 %v1344
    %1369 = vmatprep.subr.mxu0 0.0
    %1370 = vmatpush1.msra.mxu0 %v1345
    %1371 = vmatprep.subr.mxu0 0.0
    %1372 = vmatpush1.msra.mxu0 %v1346
    %1373 = vmatprep.subr.mxu0 0.0
    %1374 = vmatpush1.msra.mxu0 %v1347
    %1375 = vmatprep.subr.mxu0 0.0
    %1376 = vmatpush1.msra.mxu0 %v1348
    %1377 = vmatprep.subr.mxu0 0.0
    %1378 = vmatpush1.msra.mxu0 %v1349
    %1379 = vmatprep.subr.mxu0 0.0
    %1380 = vmatpush1.msra.mxu0 %v1350
    %1381 = vmatprep.subr.mxu0 0.0
    %1382 = vmatpush1.msra.mxu0 %v1351
    %1383 = vmatprep.subr.mxu0 0.0
    %1384 = vmatpush1.msra.mxu0 %v1352
    %1385 = vmatprep.subr.mxu0 0.0
    %1386 = vmatpush1.msra.mxu0 0.0
    %1387 = vmatprep.subr.mxu0 0.0
    %1388 = vmatpush1.msra.mxu0 0.0
    %1389 = vmatprep.subr.mxu0 0.0
    %1390 = vmatpush1.msra.mxu0 0.0
    %1391 = vmatprep.subr.mxu0 0.0
    %1392 = vmatpush1.msra.mxu0 0.0
    %1393 = vmatprep.subr.mxu0 0.0
    %1394 = vmatpush1.msra.mxu0 0.0
    %1395 = vmatprep.subr.mxu0 0.0
    %1396 = vmatpush1.msra.mxu0 0.0
    %1397 = vmatprep.subr.mxu0 0.0
    %1398 = vmatpush1.msra.mxu0 0.0
    %1399 = vmatprep.subr.mxu0 0.0
    %1400 = vmatpush1.msra.mxu0 0.0
    %1401 = vmatprep.subr.mxu0 0.0
    %1402 = vmatpush1.msra.mxu0 0.0
    %1403 = vmatprep.subr.mxu0 0.0
    %1404 = vmatpush1.msra.mxu0 0.0
    %1405 = vmatprep.subr.mxu0 0.0
    %1406 = vmatpush1.msra.mxu0 0.0
    %1407 = vmatprep.subr.mxu0 0.0
    %1408 = vmatpush1.msra.mxu0 0.0
    %1409 = vmatprep.subr.mxu0 0.0
    %1410 = vmatpush1.msra.mxu0 0.0
    %1411 = vmatprep.subr.mxu0 0.0
    %1412 = vmatpush1.msra.mxu0 0.0
    %1413 = vmatprep.subr.mxu0 0.0
    %1414 = vmatpush1.msra.mxu0 0.0
    %1415 = vmatprep.subr.mxu0 0.0
    %1416 = vmatpush1.msra.mxu0 0.0
    %1417 = vmatprep.mubr.f32.mxu0 0.0
    %1418 = vmatmul.mubr.f32.gmra.mrb[0].mxu0 %v1335
    %v1419 = vpop.f32.mrb[0].mxu0
    %v1420 = vadd.f32 0.0, %v1419
    %v1421 = vpop.f32.mrb[0].mxu0
    %1422 = vdwg.mxu0
    %v1423 = vadd.f32 %v1330, %v1420
    %v1424 = vrot.slane %v233, 3
    %v1426 = vrot.slane %v406, 2
    %v1428 = vsel %vm410, %v1424, %v1426
    %s1429 = scalar_lea.vmem %s3, 1408
    %v1430 = vld [vmem:[%s1429] sm:$0xff]
    %v1431 = vld [vmem:[%s1429 + $0x8] sm:$0xff]
    %v1432 = vld [vmem:[%s1429 + $0x10] sm:$0xff]
    %v1433 = vld [vmem:[%s1429 + $0x18] sm:$0xff]
    %v1434 = vld [vmem:[%s1429 + $0x20] sm:$0xff]
    %v1435 = vld [vmem:[%s1429 + $0x28] sm:$0xff]
    %v1436 = vld [vmem:[%s1429 + $0x30] sm:$0xff]
    %v1437 = vld [vmem:[%s1429 + $0x38] sm:$0xff]
    %v1438 = vld [vmem:[%s1429 + $0x40] sm:$0xff]
    %v1439 = vld [vmem:[%s1429 + $0x48] sm:$0xff]
    %v1440 = vld [vmem:[%s1429 + $0x50] sm:$0xff]
    %v1441 = vld [vmem:[%s1429 + $0x58] sm:$0xff]
    %v1442 = vld [vmem:[%s1429 + $0x60] sm:$0xff]
    %v1443 = vld [vmem:[%s1429 + $0x68] sm:$0xff]
    %v1444 = vld [vmem:[%s1429 + $0x70] sm:$0xff]
    %v1445 = vld [vmem:[%s1429 + $0x78] sm:$0xff]
    %1446 = vmatprep.subr.mxu0 0.0
    %1447 = vmatpush1.msra.mxu0 %v1430
    %1448 = vmatprep.subr.mxu0 0.0
    %1449 = vmatpush1.msra.mxu0 %v1431
    %1450 = vmatprep.subr.mxu0 0.0
    %1451 = vmatpush1.msra.mxu0 %v1432
    %1452 = vmatprep.subr.mxu0 0.0
    %1453 = vmatpush1.msra.mxu0 %v1433
    %1454 = vmatprep.subr.mxu0 0.0
    %1455 = vmatpush1.msra.mxu0 %v1434
    %1456 = vmatprep.subr.mxu0 0.0
    %1457 = vmatpush1.msra.mxu0 %v1435
    %1458 = vmatprep.subr.mxu0 0.0
    %1459 = vmatpush1.msra.mxu0 %v1436
    %1460 = vmatprep.subr.mxu0 0.0
    %1461 = vmatpush1.msra.mxu0 %v1437
    %1462 = vmatprep.subr.mxu0 0.0
    %1463 = vmatpush1.msra.mxu0 %v1438
    %1464 = vmatprep.subr.mxu0 0.0
    %1465 = vmatpush1.msra.mxu0 %v1439
    %1466 = vmatprep.subr.mxu0 0.0
    %1467 = vmatpush1.msra.mxu0 %v1440
    %1468 = vmatprep.subr.mxu0 0.0
    %1469 = vmatpush1.msra.mxu0 %v1441
    %1470 = vmatprep.subr.mxu0 0.0
    %1471 = vmatpush1.msra.mxu0 %v1442
    %1472 = vmatprep.subr.mxu0 0.0
    %1473 = vmatpush1.msra.mxu0 %v1443
    %1474 = vmatprep.subr.mxu0 0.0
    %1475 = vmatpush1.msra.mxu0 %v1444
    %1476 = vmatprep.subr.mxu0 0.0
    %1477 = vmatpush1.msra.mxu0 %v1445
    %1478 = vmatprep.subr.mxu0 0.0
    %1479 = vmatpush1.msra.mxu0 0.0
    %1480 = vmatprep.subr.mxu0 0.0
    %1481 = vmatpush1.msra.mxu0 0.0
    %1482 = vmatprep.subr.mxu0 0.0
    %1483 = vmatpush1.msra.mxu0 0.0
    %1484 = vmatprep.subr.mxu0 0.0
    %1485 = vmatpush1.msra.mxu0 0.0
    %1486 = vmatprep.subr.mxu0 0.0
    %1487 = vmatpush1.msra.mxu0 0.0
    %1488 = vmatprep.subr.mxu0 0.0
    %1489 = vmatpush1.msra.mxu0 0.0
    %1490 = vmatprep.subr.mxu0 0.0
    %1491 = vmatpush1.msra.mxu0 0.0
    %1492 = vmatprep.subr.mxu0 0.0
    %1493 = vmatpush1.msra.mxu0 0.0
    %1494 = vmatprep.subr.mxu0 0.0
    %1495 = vmatpush1.msra.mxu0 0.0
    %1496 = vmatprep.subr.mxu0 0.0
    %1497 = vmatpush1.msra.mxu0 0.0
    %1498 = vmatprep.subr.mxu0 0.0
    %1499 = vmatpush1.msra.mxu0 0.0
    %1500 = vmatprep.subr.mxu0 0.0
    %1501 = vmatpush1.msra.mxu0 0.0
    %1502 = vmatprep.subr.mxu0 0.0
    %1503 = vmatpush1.msra.mxu0 0.0
    %1504 = vmatprep.subr.mxu0 0.0
    %1505 = vmatpush1.msra.mxu0 0.0
    %1506 = vmatprep.subr.mxu0 0.0
    %1507 = vmatpush1.msra.mxu0 0.0
    %1508 = vmatprep.subr.mxu0 0.0
    %1509 = vmatpush1.msra.mxu0 0.0
    %1510 = vmatprep.mubr.f32.mxu0 0.0
    %1511 = vmatmul.mubr.f32.gmra.mrb[0].mxu0 %v1428
    %v1512 = vpop.f32.mrb[0].mxu0
    %v1513 = vadd.f32 0.0, %v1512
    %v1514 = vpop.f32.mrb[0].mxu0
    %1515 = vdwg.mxu0
    %v1516 = vadd.f32 %v1423, %v1513
    %v1517 = vrot.slane %v233, 4
    %v1519 = vrot.slane %v406, 3
    %v1521 = vsel %vm410, %v1517, %v1519
    %s1522 = scalar_lea.vmem %s3, 1536
    %v1523 = vld [vmem:[%s1522] sm:$0xff]
    %v1524 = vld [vmem:[%s1522 + $0x8] sm:$0xff]
    %v1525 = vld [vmem:[%s1522 + $0x10] sm:$0xff]
    %v1526 = vld [vmem:[%s1522 + $0x18] sm:$0xff]
    %v1527 = vld [vmem:[%s1522 + $0x20] sm:$0xff]
    %v1528 = vld [vmem:[%s1522 + $0x28] sm:$0xff]
    %v1529 = vld [vmem:[%s1522 + $0x30] sm:$0xff]
    %v1530 = vld [vmem:[%s1522 + $0x38] sm:$0xff]
    %v1531 = vld [vmem:[%s1522 + $0x40] sm:$0xff]
    %v1532 = vld [vmem:[%s1522 + $0x48] sm:$0xff]
    %v1533 = vld [vmem:[%s1522 + $0x50] sm:$0xff]
    %v1534 = vld [vmem:[%s1522 + $0x58] sm:$0xff]
    %v1535 = vld [vmem:[%s1522 + $0x60] sm:$0xff]
    %v1536 = vld [vmem:[%s1522 + $0x68] sm:$0xff]
    %v1537 = vld [vmem:[%s1522 + $0x70] sm:$0xff]
    %v1538 = vld [vmem:[%s1522 + $0x78] sm:$0xff]
    %1539 = vmatprep.subr.mxu0 0.0
    %1540 = vmatpush1.msra.mxu0 %v1523
    %1541 = vmatprep.subr.mxu0 0.0
    %1542 = vmatpush1.msra.mxu0 %v1524
    %1543 = vmatprep.subr.mxu0 0.0
    %1544 = vmatpush1.msra.mxu0 %v1525
    %1545 = vmatprep.subr.mxu0 0.0
    %1546 = vmatpush1.msra.mxu0 %v1526
    %1547 = vmatprep.subr.mxu0 0.0
    %1548 = vmatpush1.msra.mxu0 %v1527
    %1549 = vmatprep.subr.mxu0 0.0
    %1550 = vmatpush1.msra.mxu0 %v1528
    %1551 = vmatprep.subr.mxu0 0.0
    %1552 = vmatpush1.msra.mxu0 %v1529
    %1553 = vmatprep.subr.mxu0 0.0
    %1554 = vmatpush1.msra.mxu0 %v1530
    %1555 = vmatprep.subr.mxu0 0.0
    %1556 = vmatpush1.msra.mxu0 %v1531
    %1557 = vmatprep.subr.mxu0 0.0
    %1558 = vmatpush1.msra.mxu0 %v1532
    %1559 = vmatprep.subr.mxu0 0.0
    %1560 = vmatpush1.msra.mxu0 %v1533
    %1561 = vmatprep.subr.mxu0 0.0
    %1562 = vmatpush1.msra.mxu0 %v1534
    %1563 = vmatprep.subr.mxu0 0.0
    %1564 = vmatpush1.msra.mxu0 %v1535
    %1565 = vmatprep.subr.mxu0 0.0
    %1566 = vmatpush1.msra.mxu0 %v1536
    %1567 = vmatprep.subr.mxu0 0.0
    %1568 = vmatpush1.msra.mxu0 %v1537
    %1569 = vmatprep.subr.mxu0 0.0
    %1570 = vmatpush1.msra.mxu0 %v1538
    %1571 = vmatprep.subr.mxu0 0.0
    %1572 = vmatpush1.msra.mxu0 0.0
    %1573 = vmatprep.subr.mxu0 0.0
    %1574 = vmatpush1.msra.mxu0 0.0
    %1575 = vmatprep.subr.mxu0 0.0
    %1576 = vmatpush1.msra.mxu0 0.0
    %1577 = vmatprep.subr.mxu0 0.0
    %1578 = vmatpush1.msra.mxu0 0.0
    %1579 = vmatprep.subr.mxu0 0.0
    %1580 = vmatpush1.msra.mxu0 0.0
    %1581 = vmatprep.subr.mxu0 0.0
    %1582 = vmatpush1.msra.mxu0 0.0
    %1583 = vmatprep.subr.mxu0 0.0
    %1584 = vmatpush1.msra.mxu0 0.0
    %1585 = vmatprep.subr.mxu0 0.0
    %1586 = vmatpush1.msra.mxu0 0.0
    %1587 = vmatprep.subr.mxu0 0.0
    %1588 = vmatpush1.msra.mxu0 0.0
    %1589 = vmatprep.subr.mxu0 0.0
    %1590 = vmatpush1.msra.mxu0 0.0
    %1591 = vmatprep.subr.mxu0 0.0
    %1592 = vmatpush1.msra.mxu0 0.0
    %1593 = vmatprep.subr.mxu0 0.0
    %1594 = vmatpush1.msra.mxu0 0.0
    %1595 = vmatprep.subr.mxu0 0.0
    %1596 = vmatpush1.msra.mxu0 0.0
    %1597 = vmatprep.subr.mxu0 0.0
    %1598 = vmatpush1.msra.mxu0 0.0
    %1599 = vmatprep.subr.mxu0 0.0
    %1600 = vmatpush1.msra.mxu0 0.0
    %1601 = vmatprep.subr.mxu0 0.0
    %1602 = vmatpush1.msra.mxu0 0.0
    %1603 = vmatprep.mubr.f32.mxu0 0.0
    %1604 = vmatmul.mubr.f32.gmra.mrb[0].mxu0 %v1521
    %v1605 = vpop.f32.mrb[0].mxu0
    %v1606 = vadd.f32 0.0, %v1605
    %v1607 = vpop.f32.mrb[0].mxu0
    %1608 = vdwg.mxu0
    %v1609 = vadd.f32 %v1516, %v1606
    %v1610 = vrot.slane %v233, 5
    %v1612 = vrot.slane %v406, 4
    %v1614 = vsel %vm410, %v1610, %v1612
    %s1615 = scalar_lea.vmem %s3, 1664
    %v1616 = vld [vmem:[%s1615] sm:$0xff]
    %v1617 = vld [vmem:[%s1615 + $0x8] sm:$0xff]
    %v1618 = vld [vmem:[%s1615 + $0x10] sm:$0xff]
    %v1619 = vld [vmem:[%s1615 + $0x18] sm:$0xff]
    %v1620 = vld [vmem:[%s1615 + $0x20] sm:$0xff]
    %v1621 = vld [vmem:[%s1615 + $0x28] sm:$0xff]
    %v1622 = vld [vmem:[%s1615 + $0x30] sm:$0xff]
    %v1623 = vld [vmem:[%s1615 + $0x38] sm:$0xff]
    %v1624 = vld [vmem:[%s1615 + $0x40] sm:$0xff]
    %v1625 = vld [vmem:[%s1615 + $0x48] sm:$0xff]
    %v1626 = vld [vmem:[%s1615 + $0x50] sm:$0xff]
    %v1627 = vld [vmem:[%s1615 + $0x58] sm:$0xff]
    %v1628 = vld [vmem:[%s1615 + $0x60] sm:$0xff]
    %v1629 = vld [vmem:[%s1615 + $0x68] sm:$0xff]
    %v1630 = vld [vmem:[%s1615 + $0x70] sm:$0xff]
    %v1631 = vld [vmem:[%s1615 + $0x78] sm:$0xff]
    %1632 = vmatprep.subr.mxu0 0.0
    %1633 = vmatpush1.msra.mxu0 %v1616
    %1634 = vmatprep.subr.mxu0 0.0
    %1635 = vmatpush1.msra.mxu0 %v1617
    %1636 = vmatprep.subr.mxu0 0.0
    %1637 = vmatpush1.msra.mxu0 %v1618
    %1638 = vmatprep.subr.mxu0 0.0
    %1639 = vmatpush1.msra.mxu0 %v1619
    %1640 = vmatprep.subr.mxu0 0.0
    %1641 = vmatpush1.msra.mxu0 %v1620
    %1642 = vmatprep.subr.mxu0 0.0
    %1643 = vmatpush1.msra.mxu0 %v1621
    %1644 = vmatprep.subr.mxu0 0.0
    %1645 = vmatpush1.msra.mxu0 %v1622
    %1646 = vmatprep.subr.mxu0 0.0
    %1647 = vmatpush1.msra.mxu0 %v1623
    %1648 = vmatprep.subr.mxu0 0.0
    %1649 = vmatpush1.msra.mxu0 %v1624
    %1650 = vmatprep.subr.mxu0 0.0
    %1651 = vmatpush1.msra.mxu0 %v1625
    %1652 = vmatprep.subr.mxu0 0.0
    %1653 = vmatpush1.msra.mxu0 %v1626
    %1654 = vmatprep.subr.mxu0 0.0
    %1655 = vmatpush1.msra.mxu0 %v1627
    %1656 = vmatprep.subr.mxu0 0.0
    %1657 = vmatpush1.msra.mxu0 %v1628
    %1658 = vmatprep.subr.mxu0 0.0
    %1659 = vmatpush1.msra.mxu0 %v1629
    %1660 = vmatprep.subr.mxu0 0.0
    %1661 = vmatpush1.msra.mxu0 %v1630
    %1662 = vmatprep.subr.mxu0 0.0
    %1663 = vmatpush1.msra.mxu0 %v1631
    %1664 = vmatprep.subr.mxu0 0.0
    %1665 = vmatpush1.msra.mxu0 0.0
    %1666 = vmatprep.subr.mxu0 0.0
    %1667 = vmatpush1.msra.mxu0 0.0
    %1668 = vmatprep.subr.mxu0 0.0
    %1669 = vmatpush1.msra.mxu0 0.0
    %1670 = vmatprep.subr.mxu0 0.0
    %1671 = vmatpush1.msra.mxu0 0.0
    %1672 = vmatprep.subr.mxu0 0.0
    %1673 = vmatpush1.msra.mxu0 0.0
    %1674 = vmatprep.subr.mxu0 0.0
    %1675 = vmatpush1.msra.mxu0 0.0
    %1676 = vmatprep.subr.mxu0 0.0
    %1677 = vmatpush1.msra.mxu0 0.0
    %1678 = vmatprep.subr.mxu0 0.0
    %1679 = vmatpush1.msra.mxu0 0.0
    %1680 = vmatprep.subr.mxu0 0.0
    %1681 = vmatpush1.msra.mxu0 0.0
    %1682 = vmatprep.subr.mxu0 0.0
    %1683 = vmatpush1.msra.mxu0 0.0
    %1684 = vmatprep.subr.mxu0 0.0
    %1685 = vmatpush1.msra.mxu0 0.0
    %1686 = vmatprep.subr.mxu0 0.0
    %1687 = vmatpush1.msra.mxu0 0.0
    %1688 = vmatprep.subr.mxu0 0.0
    %1689 = vmatpush1.msra.mxu0 0.0
    %1690 = vmatprep.subr.mxu0 0.0
    %1691 = vmatpush1.msra.mxu0 0.0
    %1692 = vmatprep.subr.mxu0 0.0
    %1693 = vmatpush1.msra.mxu0 0.0
    %1694 = vmatprep.subr.mxu0 0.0
    %1695 = vmatpush1.msra.mxu0 0.0
    %1696 = vmatprep.mubr.f32.mxu0 0.0
    %1697 = vmatmul.mubr.f32.gmra.mrb[0].mxu0 %v1614
    %v1698 = vpop.f32.mrb[0].mxu0
    %v1699 = vadd.f32 0.0, %v1698
    %v1700 = vpop.f32.mrb[0].mxu0
    %1701 = vdwg.mxu0
    %v1702 = vadd.f32 %v1609, %v1699
    %v1703 = vrot.slane %v233, 6
    %v1705 = vrot.slane %v406, 5
    %v1707 = vsel %vm410, %v1703, %v1705
    %s1708 = scalar_lea.vmem %s3, 1792
    %v1709 = vld [vmem:[%s1708] sm:$0xff]
    %v1710 = vld [vmem:[%s1708 + $0x8] sm:$0xff]
    %v1711 = vld [vmem:[%s1708 + $0x10] sm:$0xff]
    %v1712 = vld [vmem:[%s1708 + $0x18] sm:$0xff]
    %v1713 = vld [vmem:[%s1708 + $0x20] sm:$0xff]
    %v1714 = vld [vmem:[%s1708 + $0x28] sm:$0xff]
    %v1715 = vld [vmem:[%s1708 + $0x30] sm:$0xff]
    %v1716 = vld [vmem:[%s1708 + $0x38] sm:$0xff]
    %v1717 = vld [vmem:[%s1708 + $0x40] sm:$0xff]
    %v1718 = vld [vmem:[%s1708 + $0x48] sm:$0xff]
    %v1719 = vld [vmem:[%s1708 + $0x50] sm:$0xff]
    %v1720 = vld [vmem:[%s1708 + $0x58] sm:$0xff]
    %v1721 = vld [vmem:[%s1708 + $0x60] sm:$0xff]
    %v1722 = vld [vmem:[%s1708 + $0x68] sm:$0xff]
    %v1723 = vld [vmem:[%s1708 + $0x70] sm:$0xff]
    %v1724 = vld [vmem:[%s1708 + $0x78] sm:$0xff]
    %1725 = vmatprep.subr.mxu0 0.0
    %1726 = vmatpush1.msra.mxu0 %v1709
    %1727 = vmatprep.subr.mxu0 0.0
    %1728 = vmatpush1.msra.mxu0 %v1710
    %1729 = vmatprep.subr.mxu0 0.0
    %1730 = vmatpush1.msra.mxu0 %v1711
    %1731 = vmatprep.subr.mxu0 0.0
    %1732 = vmatpush1.msra.mxu0 %v1712
    %1733 = vmatprep.subr.mxu0 0.0
    %1734 = vmatpush1.msra.mxu0 %v1713
    %1735 = vmatprep.subr.mxu0 0.0
    %1736 = vmatpush1.msra.mxu0 %v1714
    %1737 = vmatprep.subr.mxu0 0.0
    %1738 = vmatpush1.msra.mxu0 %v1715
    %1739 = vmatprep.subr.mxu0 0.0
    %1740 = vmatpush1.msra.mxu0 %v1716
    %1741 = vmatprep.subr.mxu0 0.0
    %1742 = vmatpush1.msra.mxu0 %v1717
    %1743 = vmatprep.subr.mxu0 0.0
    %1744 = vmatpush1.msra.mxu0 %v1718
    %1745 = vmatprep.subr.mxu0 0.0
    %1746 = vmatpush1.msra.mxu0 %v1719
    %1747 = vmatprep.subr.mxu0 0.0
    %1748 = vmatpush1.msra.mxu0 %v1720
    %1749 = vmatprep.subr.mxu0 0.0
    %1750 = vmatpush1.msra.mxu0 %v1721
    %1751 = vmatprep.subr.mxu0 0.0
    %1752 = vmatpush1.msra.mxu0 %v1722
    %1753 = vmatprep.subr.mxu0 0.0
    %1754 = vmatpush1.msra.mxu0 %v1723
    %1755 = vmatprep.subr.mxu0 0.0
    %1756 = vmatpush1.msra.mxu0 %v1724
    %1757 = vmatprep.subr.mxu0 0.0
    %1758 = vmatpush1.msra.mxu0 0.0
    %1759 = vmatprep.subr.mxu0 0.0
    %1760 = vmatpush1.msra.mxu0 0.0
    %1761 = vmatprep.subr.mxu0 0.0
    %1762 = vmatpush1.msra.mxu0 0.0
    %1763 = vmatprep.subr.mxu0 0.0
    %1764 = vmatpush1.msra.mxu0 0.0
    %1765 = vmatprep.subr.mxu0 0.0
    %1766 = vmatpush1.msra.mxu0 0.0
    %1767 = vmatprep.subr.mxu0 0.0
    %1768 = vmatpush1.msra.mxu0 0.0
    %1769 = vmatprep.subr.mxu0 0.0
    %1770 = vmatpush1.msra.mxu0 0.0
    %1771 = vmatprep.subr.mxu0 0.0
    %1772 = vmatpush1.msra.mxu0 0.0
    %1773 = vmatprep.subr.mxu0 0.0
    %1774 = vmatpush1.msra.mxu0 0.0
    %1775 = vmatprep.subr.mxu0 0.0
    %1776 = vmatpush1.msra.mxu0 0.0
    %1777 = vmatprep.subr.mxu0 0.0
    %1778 = vmatpush1.msra.mxu0 0.0
    %1779 = vmatprep.subr.mxu0 0.0
    %1780 = vmatpush1.msra.mxu0 0.0
    %1781 = vmatprep.subr.mxu0 0.0
    %1782 = vmatpush1.msra.mxu0 0.0
    %1783 = vmatprep.subr.mxu0 0.0
    %1784 = vmatpush1.msra.mxu0 0.0
    %1785 = vmatprep.subr.mxu0 0.0
    %1786 = vmatpush1.msra.mxu0 0.0
    %1787 = vmatprep.subr.mxu0 0.0
    %1788 = vmatpush1.msra.mxu0 0.0
    %1789 = vmatprep.mubr.f32.mxu0 0.0
    %1790 = vmatmul.mubr.f32.gmra.mrb[0].mxu0 %v1707
    %v1791 = vpop.f32.mrb[0].mxu0
    %v1792 = vadd.f32 0.0, %v1791
    %v1793 = vpop.f32.mrb[0].mxu0
    %1794 = vdwg.mxu0
    %v1795 = vadd.f32 %v1702, %v1792
    %v1796 = vrot.slane %v233, 7
    %v1798 = vrot.slane %v406, 6
    %v1800 = vsel %vm410, %v1796, %v1798
    %s1801 = scalar_lea.vmem %s3, 1920
    %v1802 = vld [vmem:[%s1801] sm:$0xff]
    %v1803 = vld [vmem:[%s1801 + $0x8] sm:$0xff]
    %v1804 = vld [vmem:[%s1801 + $0x10] sm:$0xff]
    %v1805 = vld [vmem:[%s1801 + $0x18] sm:$0xff]
    %v1806 = vld [vmem:[%s1801 + $0x20] sm:$0xff]
    %v1807 = vld [vmem:[%s1801 + $0x28] sm:$0xff]
    %v1808 = vld [vmem:[%s1801 + $0x30] sm:$0xff]
    %v1809 = vld [vmem:[%s1801 + $0x38] sm:$0xff]
    %v1810 = vld [vmem:[%s1801 + $0x40] sm:$0xff]
    %v1811 = vld [vmem:[%s1801 + $0x48] sm:$0xff]
    %v1812 = vld [vmem:[%s1801 + $0x50] sm:$0xff]
    %v1813 = vld [vmem:[%s1801 + $0x58] sm:$0xff]
    %v1814 = vld [vmem:[%s1801 + $0x60] sm:$0xff]
    %v1815 = vld [vmem:[%s1801 + $0x68] sm:$0xff]
    %v1816 = vld [vmem:[%s1801 + $0x70] sm:$0xff]
    %v1817 = vld [vmem:[%s1801 + $0x78] sm:$0xff]
    %1818 = vmatprep.subr.mxu0 0.0
    %1819 = vmatpush1.msra.mxu0 %v1802
    %1820 = vmatprep.subr.mxu0 0.0
    %1821 = vmatpush1.msra.mxu0 %v1803
    %1822 = vmatprep.subr.mxu0 0.0
    %1823 = vmatpush1.msra.mxu0 %v1804
    %1824 = vmatprep.subr.mxu0 0.0
    %1825 = vmatpush1.msra.mxu0 %v1805
    %1826 = vmatprep.subr.mxu0 0.0
    %1827 = vmatpush1.msra.mxu0 %v1806
    %1828 = vmatprep.subr.mxu0 0.0
    %1829 = vmatpush1.msra.mxu0 %v1807
    %1830 = vmatprep.subr.mxu0 0.0
    %1831 = vmatpush1.msra.mxu0 %v1808
    %1832 = vmatprep.subr.mxu0 0.0
    %1833 = vmatpush1.msra.mxu0 %v1809
    %1834 = vmatprep.subr.mxu0 0.0
    %1835 = vmatpush1.msra.mxu0 %v1810
    %1836 = vmatprep.subr.mxu0 0.0
    %1837 = vmatpush1.msra.mxu0 %v1811
    %1838 = vmatprep.subr.mxu0 0.0
    %1839 = vmatpush1.msra.mxu0 %v1812
    %1840 = vmatprep.subr.mxu0 0.0
    %1841 = vmatpush1.msra.mxu0 %v1813
    %1842 = vmatprep.subr.mxu0 0.0
    %1843 = vmatpush1.msra.mxu0 %v1814
    %1844 = vmatprep.subr.mxu0 0.0
    %1845 = vmatpush1.msra.mxu0 %v1815
    %1846 = vmatprep.subr.mxu0 0.0
    %1847 = vmatpush1.msra.mxu0 %v1816
    %1848 = vmatprep.subr.mxu0 0.0
    %1849 = vmatpush1.msra.mxu0 %v1817
    %1850 = vmatprep.subr.mxu0 0.0
    %1851 = vmatpush1.msra.mxu0 0.0
    %1852 = vmatprep.subr.mxu0 0.0
    %1853 = vmatpush1.msra.mxu0 0.0
    %1854 = vmatprep.subr.mxu0 0.0
    %1855 = vmatpush1.msra.mxu0 0.0
    %1856 = vmatprep.subr.mxu0 0.0
    %1857 = vmatpush1.msra.mxu0 0.0
    %1858 = vmatprep.subr.mxu0 0.0
    %1859 = vmatpush1.msra.mxu0 0.0
    %1860 = vmatprep.subr.mxu0 0.0
    %1861 = vmatpush1.msra.mxu0 0.0
    %1862 = vmatprep.subr.mxu0 0.0
    %1863 = vmatpush1.msra.mxu0 0.0
    %1864 = vmatprep.subr.mxu0 0.0
    %1865 = vmatpush1.msra.mxu0 0.0
    %1866 = vmatprep.subr.mxu0 0.0
    %1867 = vmatpush1.msra.mxu0 0.0
    %1868 = vmatprep.subr.mxu0 0.0
    %1869 = vmatpush1.msra.mxu0 0.0
    %1870 = vmatprep.subr.mxu0 0.0
    %1871 = vmatpush1.msra.mxu0 0.0
    %1872 = vmatprep.subr.mxu0 0.0
    %1873 = vmatpush1.msra.mxu0 0.0
    %1874 = vmatprep.subr.mxu0 0.0
    %1875 = vmatpush1.msra.mxu0 0.0
    %1876 = vmatprep.subr.mxu0 0.0
    %1877 = vmatpush1.msra.mxu0 0.0
    %1878 = vmatprep.subr.mxu0 0.0
    %1879 = vmatpush1.msra.mxu0 0.0
    %1880 = vmatprep.subr.mxu0 0.0
    %1881 = vmatpush1.msra.mxu0 0.0
    %1882 = vmatprep.mubr.f32.mxu0 0.0
    %1883 = vmatmul.mubr.f32.gmra.mrb[0].mxu0 %v1800
    %v1884 = vpop.f32.mrb[0].mxu0
    %v1885 = vadd.f32 0.0, %v1884
    %v1886 = vpop.f32.mrb[0].mxu0
    %1887 = vdwg.mxu0
    %v1888 = vadd.f32 %v1795, %v1885
    %v1889 = vld [vmem:[%s4] sm:$0x1]
    %v1891 = vlaneseq
    %v1892 = vshrl.u32 %v1891, 7
    %v1893 = vsub.s32 0, %v1892
    %v1894 = vrot.slane %v1889, %v1893
    %v1896 = vadd.f32 %v1888, %v1894
    %v1897 = vmax.f32 %v1896, 0.0
    %v1898 = vld [vmem:[%s5] sm:$0xff]
    %v1899 = vld [vmem:[%s5 + $0x8] sm:$0xff]
    %v1900 = vld [vmem:[%s5 + $0x10] sm:$0xff]
    %v1901 = vld [vmem:[%s5 + $0x18] sm:$0xff]
    %v1902 = vld [vmem:[%s5 + $0x20] sm:$0xff]
    %v1903 = vld [vmem:[%s5 + $0x28] sm:$0xff]
    %v1904 = vld [vmem:[%s5 + $0x30] sm:$0xff]
    %v1905 = vld [vmem:[%s5 + $0x38] sm:$0xff]
    %v1906 = vld [vmem:[%s6] sm:$0x1]
    %v1908 = vlaneseq
    %v1909 = vshrl.u32 %v1908, 7
    %v1910 = vsub.s32 0, %v1909
    %v1911 = vrot.slane %v1906, %v1910
    %vm1913 = vcmask 523264
    %v1915 = vsel %vm1913, %v1897, 0
    %1917 = vmatprep.subr.mxu0 0.0
    %1918 = vmatpush1.msra.mxu0 %v1898
    %1919 = vmatprep.subr.mxu0 0.0
    %1920 = vmatpush1.msra.mxu0 %v1899
    %1921 = vmatprep.subr.mxu0 0.0
    %1922 = vmatpush1.msra.mxu0 %v1900
    %1923 = vmatprep.subr.mxu0 0.0
    %1924 = vmatpush1.msra.mxu0 %v1901
    %1925 = vmatprep.subr.mxu0 0.0
    %1926 = vmatpush1.msra.mxu0 %v1902
    %1927 = vmatprep.subr.mxu0 0.0
    %1928 = vmatpush1.msra.mxu0 %v1903
    %1929 = vmatprep.subr.mxu0 0.0
    %1930 = vmatpush1.msra.mxu0 %v1904
    %1931 = vmatprep.subr.mxu0 0.0
    %1932 = vmatpush1.msra.mxu0 %v1905
    %1933 = vmatprep.subr.mxu0 0.0
    %1934 = vmatpush1.msra.mxu0 0.0
    %1935 = vmatprep.subr.mxu0 0.0
    %1936 = vmatpush1.msra.mxu0 0.0
    %1937 = vmatprep.subr.mxu0 0.0
    %1938 = vmatpush1.msra.mxu0 0.0
    %1939 = vmatprep.subr.mxu0 0.0
    %1940 = vmatpush1.msra.mxu0 0.0
    %1941 = vmatprep.subr.mxu0 0.0
    %1942 = vmatpush1.msra.mxu0 0.0
    %1943 = vmatprep.subr.mxu0 0.0
    %1944 = vmatpush1.msra.mxu0 0.0
    %1945 = vmatprep.subr.mxu0 0.0
    %1946 = vmatpush1.msra.mxu0 0.0
    %1947 = vmatprep.subr.mxu0 0.0
    %1948 = vmatpush1.msra.mxu0 0.0
    %1949 = vmatprep.subr.mxu0 0.0
    %1950 = vmatpush1.msra.mxu0 0.0
    %1951 = vmatprep.subr.mxu0 0.0
    %1952 = vmatpush1.msra.mxu0 0.0
    %1953 = vmatprep.subr.mxu0 0.0
    %1954 = vmatpush1.msra.mxu0 0.0
    %1955 = vmatprep.subr.mxu0 0.0
    %1956 = vmatpush1.msra.mxu0 0.0
    %1957 = vmatprep.subr.mxu0 0.0
    %1958 = vmatpush1.msra.mxu0 0.0
    %1959 = vmatprep.subr.mxu0 0.0
    %1960 = vmatpush1.msra.mxu0 0.0
    %1961 = vmatprep.subr.mxu0 0.0
    %1962 = vmatpush1.msra.mxu0 0.0
    %1963 = vmatprep.subr.mxu0 0.0
    %1964 = vmatpush1.msra.mxu0 0.0
    %1965 = vmatprep.subr.mxu0 0.0
    %1966 = vmatpush1.msra.mxu0 0.0
    %1967 = vmatprep.subr.mxu0 0.0
    %1968 = vmatpush1.msra.mxu0 0.0
    %1969 = vmatprep.subr.mxu0 0.0
    %1970 = vmatpush1.msra.mxu0 0.0
    %1971 = vmatprep.subr.mxu0 0.0
    %1972 = vmatpush1.msra.mxu0 0.0
    %1973 = vmatprep.subr.mxu0 0.0
    %1974 = vmatpush1.msra.mxu0 0.0
    %1975 = vmatprep.subr.mxu0 0.0
    %1976 = vmatpush1.msra.mxu0 0.0
    %1977 = vmatprep.subr.mxu0 0.0
    %1978 = vmatpush1.msra.mxu0 0.0
    %1979 = vmatprep.subr.mxu0 0.0
    %1980 = vmatpush1.msra.mxu0 0.0
    %1981 = vmatprep.mubr.f32.mxu0 0.0
    %1982 = vmatmul.mubr.f32.gmra.mrb[0].mxu0 %v1915
    %v1983 = vpop.f32.mrb[0].mxu0
    %v1984 = vadd.f32 %v1911, %v1983
    %v1985 = vpop.f32.mrb[0].mxu0
    %1986 = vdwg.mxu0
    %v1987 = vmax.f32 %v1984, 0.0
    %v1988 = vld [vmem:[%s7] sm:$0xff]
    %v1989 = vld [vmem:[%s7 + $0x8] sm:$0xff]
    %v1990 = vld [vmem:[%s7 + $0x10] sm:$0xff]
    %v1991 = vld [vmem:[%s7 + $0x18] sm:$0xff]
    %v1992 = vld [vmem:[%s8] sm:$0x1]
    %v1994 = vlaneseq
    %v1995 = vshrl.u32 %v1994, 7
    %v1996 = vsub.s32 0, %v1995
    %v1997 = vrot.slane %v1992, %v1996
    %vm1999 = vcmask 261120
    %v2001 = vsel %vm1999, %v1987, 0
    %2003 = vmatprep.subr.mxu0 0.0
    %2004 = vmatpush1.msra.mxu0 %v1988
    %2005 = vmatprep.subr.mxu0 0.0
    %2006 = vmatpush1.msra.mxu0 %v1989
    %2007 = vmatprep.subr.mxu0 0.0
    %2008 = vmatpush1.msra.mxu0 %v1990
    %2009 = vmatprep.subr.mxu0 0.0
    %2010 = vmatpush1.msra.mxu0 %v1991
    %2011 = vmatprep.subr.mxu0 0.0
    %2012 = vmatpush1.msra.mxu0 0.0
    %2013 = vmatprep.subr.mxu0 0.0
    %2014 = vmatpush1.msra.mxu0 0.0
    %2015 = vmatprep.subr.mxu0 0.0
    %2016 = vmatpush1.msra.mxu0 0.0
    %2017 = vmatprep.subr.mxu0 0.0
    %2018 = vmatpush1.msra.mxu0 0.0
    %2019 = vmatprep.subr.mxu0 0.0
    %2020 = vmatpush1.msra.mxu0 0.0
    %2021 = vmatprep.subr.mxu0 0.0
    %2022 = vmatpush1.msra.mxu0 0.0
    %2023 = vmatprep.subr.mxu0 0.0
    %2024 = vmatpush1.msra.mxu0 0.0
    %2025 = vmatprep.subr.mxu0 0.0
    %2026 = vmatpush1.msra.mxu0 0.0
    %2027 = vmatprep.subr.mxu0 0.0
    %2028 = vmatpush1.msra.mxu0 0.0
    %2029 = vmatprep.subr.mxu0 0.0
    %2030 = vmatpush1.msra.mxu0 0.0
    %2031 = vmatprep.subr.mxu0 0.0
    %2032 = vmatpush1.msra.mxu0 0.0
    %2033 = vmatprep.subr.mxu0 0.0
    %2034 = vmatpush1.msra.mxu0 0.0
    %2035 = vmatprep.subr.mxu0 0.0
    %2036 = vmatpush1.msra.mxu0 0.0
    %2037 = vmatprep.subr.mxu0 0.0
    %2038 = vmatpush1.msra.mxu0 0.0
    %2039 = vmatprep.subr.mxu0 0.0
    %2040 = vmatpush1.msra.mxu0 0.0
    %2041 = vmatprep.subr.mxu0 0.0
    %2042 = vmatpush1.msra.mxu0 0.0
    %2043 = vmatprep.subr.mxu0 0.0
    %2044 = vmatpush1.msra.mxu0 0.0
    %2045 = vmatprep.subr.mxu0 0.0
    %2046 = vmatpush1.msra.mxu0 0.0
    %2047 = vmatprep.subr.mxu0 0.0
    %2048 = vmatpush1.msra.mxu0 0.0
    %2049 = vmatprep.subr.mxu0 0.0
    %2050 = vmatpush1.msra.mxu0 0.0
    %2051 = vmatprep.subr.mxu0 0.0
    %2052 = vmatpush1.msra.mxu0 0.0
    %2053 = vmatprep.subr.mxu0 0.0
    %2054 = vmatpush1.msra.mxu0 0.0
    %2055 = vmatprep.subr.mxu0 0.0
    %2056 = vmatpush1.msra.mxu0 0.0
    %2057 = vmatprep.subr.mxu0 0.0
    %2058 = vmatpush1.msra.mxu0 0.0
    %2059 = vmatprep.subr.mxu0 0.0
    %2060 = vmatpush1.msra.mxu0 0.0
    %2061 = vmatprep.subr.mxu0 0.0
    %2062 = vmatpush1.msra.mxu0 0.0
    %2063 = vmatprep.subr.mxu0 0.0
    %2064 = vmatpush1.msra.mxu0 0.0
    %2065 = vmatprep.subr.mxu0 0.0
    %2066 = vmatpush1.msra.mxu0 0.0
    %2067 = vmatprep.mubr.f32.mxu0 0.0
    %2068 = vmatmul.mubr.f32.gmra.mrb[0].mxu0 %v2001
    %v2069 = vpop.f32.mrb[0].mxu0
    %v2070 = vadd.f32 %v1997, %v2069
    %v2071 = vpop.f32.mrb[0].mxu0
    %2072 = vdwg.mxu0
    %v2073 = vmax.f32 %v2070, 0.0
    %v2074 = vld [vmem:[%s9] sm:$0xff]
    %v2075 = vld [vmem:[%s9 + $0x8] sm:$0xff]
    %v2076 = vld [vmem:[%s9 + $0x10] sm:$0xff]
    %v2077 = vld [vmem:[%s9 + $0x18] sm:$0xff]
    %v2078 = vld [vmem:[%s10] sm:$0x1]
    %v2080 = vlaneseq
    %v2081 = vshrl.u32 %v2080, 7
    %v2082 = vsub.s32 0, %v2081
    %v2083 = vrot.slane %v2078, %v2082
    %v2086 = vsel %vm1999, %v2073, 0
    %2088 = vmatprep.subr.mxu0 0.0
    %2089 = vmatpush1.msra.mxu0 %v2074
    %2090 = vmatprep.subr.mxu0 0.0
    %2091 = vmatpush1.msra.mxu0 %v2075
    %2092 = vmatprep.subr.mxu0 0.0
    %2093 = vmatpush1.msra.mxu0 %v2076
    %2094 = vmatprep.subr.mxu0 0.0
    %2095 = vmatpush1.msra.mxu0 %v2077
    %2096 = vmatprep.subr.mxu0 0.0
    %2097 = vmatpush1.msra.mxu0 0.0
    %2098 = vmatprep.subr.mxu0 0.0
    %2099 = vmatpush1.msra.mxu0 0.0
    %2100 = vmatprep.subr.mxu0 0.0
    %2101 = vmatpush1.msra.mxu0 0.0
    %2102 = vmatprep.subr.mxu0 0.0
    %2103 = vmatpush1.msra.mxu0 0.0
    %2104 = vmatprep.subr.mxu0 0.0
    %2105 = vmatpush1.msra.mxu0 0.0
    %2106 = vmatprep.subr.mxu0 0.0
    %2107 = vmatpush1.msra.mxu0 0.0
    %2108 = vmatprep.subr.mxu0 0.0
    %2109 = vmatpush1.msra.mxu0 0.0
    %2110 = vmatprep.subr.mxu0 0.0
    %2111 = vmatpush1.msra.mxu0 0.0
    %2112 = vmatprep.subr.mxu0 0.0
    %2113 = vmatpush1.msra.mxu0 0.0
    %2114 = vmatprep.subr.mxu0 0.0
    %2115 = vmatpush1.msra.mxu0 0.0
    %2116 = vmatprep.subr.mxu0 0.0
    %2117 = vmatpush1.msra.mxu0 0.0
    %2118 = vmatprep.subr.mxu0 0.0
    %2119 = vmatpush1.msra.mxu0 0.0
    %2120 = vmatprep.subr.mxu0 0.0
    %2121 = vmatpush1.msra.mxu0 0.0
    %2122 = vmatprep.subr.mxu0 0.0
    %2123 = vmatpush1.msra.mxu0 0.0
    %2124 = vmatprep.subr.mxu0 0.0
    %2125 = vmatpush1.msra.mxu0 0.0
    %2126 = vmatprep.subr.mxu0 0.0
    %2127 = vmatpush1.msra.mxu0 0.0
    %2128 = vmatprep.subr.mxu0 0.0
    %2129 = vmatpush1.msra.mxu0 0.0
    %2130 = vmatprep.subr.mxu0 0.0
    %2131 = vmatpush1.msra.mxu0 0.0
    %2132 = vmatprep.subr.mxu0 0.0
    %2133 = vmatpush1.msra.mxu0 0.0
    %2134 = vmatprep.subr.mxu0 0.0
    %2135 = vmatpush1.msra.mxu0 0.0
    %2136 = vmatprep.subr.mxu0 0.0
    %2137 = vmatpush1.msra.mxu0 0.0
    %2138 = vmatprep.subr.mxu0 0.0
    %2139 = vmatpush1.msra.mxu0 0.0
    %2140 = vmatprep.subr.mxu0 0.0
    %2141 = vmatpush1.msra.mxu0 0.0
    %2142 = vmatprep.subr.mxu0 0.0
    %2143 = vmatpush1.msra.mxu0 0.0
    %2144 = vmatprep.subr.mxu0 0.0
    %2145 = vmatpush1.msra.mxu0 0.0
    %2146 = vmatprep.subr.mxu0 0.0
    %2147 = vmatpush1.msra.mxu0 0.0
    %2148 = vmatprep.subr.mxu0 0.0
    %2149 = vmatpush1.msra.mxu0 0.0
    %2150 = vmatprep.subr.mxu0 0.0
    %2151 = vmatpush1.msra.mxu0 0.0
    %2152 = vmatprep.mubr.f32.mxu0 0.0
    %2153 = vmatmul.mubr.f32.gmra.mrb[0].mxu0 %v2086
    %v2154 = vpop.f32.mrb[0].mxu0
    %v2155 = vadd.f32 %v2083, %v2154
    %v2156 = vpop.f32.mrb[0].mxu0
    %2157 = vdwg.mxu0
    %2159 = vrot.lane.b32.xlu0 %v2070, 98
    %v2160 = vpop.permute.xlu0 %2159
    %2163 = vrot.lane.b32.xlu0 %v1984, 100
    %v2164 = vpop.permute.xlu0 %2163
    %vm2166 = vcmask 15360
    %v2167 = vsel %vm2166, %v2155, %v2160
    %vm2168 = vcmask 31744
    %v2169 = vsel %vm2168, %v2167, %v2164
    %vm2170 = vcmask 48128
    %v2171 = vsel %vm2170, %v2169, 0.0
    %vm2172 = vcmask 58368
    %2173 = vst.msk [vmem:[%s11] sm:$0x3] %vm2172, %v2171
    %2175 = vrot.lane.b32.xlu0 %v2155, 1
    %v2176 = vpop.permute.xlu0 %2175
    %vm2178 = vcmp.gt.f32.partialorder %v2155, %v2176
    %v2179 = vsel %vm2178, 1, 0
    %2180 = vrot.lane.b32.xlu0 %v2070, 1
    %v2181 = vpop.permute.xlu0 %2180
    %vm2183 = vcmp.gt.f32.partialorder %v2070, %v2181
    %v2184 = vsel %vm2183, 1, 0
    %2185 = vrot.lane.b32.xlu0 %v1984, 1
    %v2186 = vpop.permute.xlu0 %2185
    %vm2188 = vcmp.gt.f32.partialorder %v1984, %v2186
    %v2189 = vsel %vm2188, 1, 0
    %2190 = vrot.lane.b32.xlu0 %v2179, 127
    %v2191 = vpop.permute.xlu0 %2190
    %2192 = vrot.lane.b32.xlu0 %v2184, 96
    %v2193 = vpop.permute.xlu0 %2192
    %2194 = vrot.lane.b32.xlu0 %v2189, 97
    %v2195 = vpop.permute.xlu0 %2194
    %vm2196 = vcmask 7168
    %v2197 = vsel %vm2196, %v2191, %v2193
    %v2198 = vsel %vm2166, %v2197, %v2195
    %vm2199 = vcmask 23552
    %v2200 = vsel %vm2199, %v2198, 0
    %2201 = vst.msk [vmem:[#allocation2] sm:$0x3] %vm2172, %v2200
    // Predicated region
    $region46: #{fcn_forward.1} parent=1 // pred_check
      _
    $region47: #{fcn_forward.1} parent=1 // pred_check_branch
      %2203 = sbr.rel (0) target = $region49
    $region48: #{fcn_forward.1} parent=1 // pred_region
      _
    $region49: #{fcn_forward.1} parent=1 // pred_fallthru
      _
    // Predicated region
    $region50: #{fcn_forward.1} parent=1 // pred_check
      _
    $region51: #{fcn_forward.1} parent=1 // pred_check_branch
      %2205 = sbr.rel (0) target = $region53
    $region52: #{fcn_forward.1} parent=1 // pred_region
      %s2207 = ssub.s32 32, 32
      %2208 = vsyncadd [#allocation3], %s2207
      %s2210 = sshll.u32 [#allocation2], 4
      %s2211 = int_to_ptr.vmem [resolvable:$true] %s2210
      %2213 = dma.vmem_to_hbm [thread:$0]  %s2211, 32, %s12, [#allocation3]
    $region53: #{fcn_forward.1} parent=1 // pred_fallthru
      _
    // Predicated region
    $region54: #{fcn_forward.1} parent=1 // pred_check
      _
    $region55: #{fcn_forward.1} parent=1 // pred_check_branch
      %2215 = sbr.rel (0) target = $region57
    $region56: #{fcn_forward.1} parent=1 // pred_region
      _
    $region57: #{fcn_forward.1} parent=1 // pred_fallthru
      _
    // Predicated region
    $region58: #{fcn_forward.1} parent=1 // pred_check
      _
    $region59: #{fcn_forward.1} parent=1 // pred_check_branch
      %2217 = sbr.rel (0) target = $region61
    $region60: #{fcn_forward.1} parent=1 // pred_region
      %2218 = dma.done [#allocation3], 32
    $region61: #{fcn_forward.1} parent=1 // pred_fallthru
      _
    %2219 = vsyncpa [#allocation3], 1

</llo_original>
